<compile_context>
chip_gen: v7x
topology: tpu7x:2x2x1
jax: 0.10.0
libtpu: 0.0.40
codegen_flags: <defaults>
</compile_context>

<pallas_src>
import functools

import jax
import jax.numpy as jnp
from jax import lax
from jax.experimental import pallas as pl
from jax.experimental.pallas import tpu as pltpu


_LAYER_CFG = [
    # (Cin, Cout, stride, silu_after)
    (2, 16, 1, True),
    (16, 64, 1, True),
    (64, 128, 2, True),
    (128, 128, 1, True),
    (128, 192, 2, False),
]

# Input-resolution halo required by the full 5-layer stack (k=3, pad=1, two
# stride-2 layers): left 7, right 4 rows around each tile of the input.
_HALO_L = 7
_HALO_R = 4


def _store_act(dst_ref, h, g_start, valid_len, boundary):
    """Store activations, zeroing rows outside [0, valid_len) on boundary tiles.

    The zeroing reproduces each nn.Conv1d's zero padding at the global sequence
    boundaries; for interior tiles the halo rows hold real data so the mask is
    a provable no-op and is skipped (pl.when).  h: (rows, C) f32, row j <->
    global position g_start + j.
    """

    @pl.when(boundary)
    def _():
        rows = h.shape[0]
        pos = g_start + lax.broadcasted_iota(jnp.int32, (rows, 1), 0)
        keep = (pos >= 0) & (pos < valid_len)
        dst_ref[...] = jnp.where(keep, h, 0.0).astype(dst_ref.dtype)

    @pl.when(jnp.logical_not(boundary))
    def _():
        dst_ref[...] = h.astype(dst_ref.dtype)


def _conv_im2col(src_ref, w_ref, b_ref, *, stride, n_out, silu):
    """k=3 conv as one bf16 MXU matmul over an im2col matrix.

    src_ref: (W, Cin) VMEM window (f32 or bf16).  Output row j uses src rows
    {stride*j, stride*j + 1, stride*j + 2} (halo bookkeeping by the caller),
    so stride-2 layers only ever touch the rows they actually need.
    """
    if stride == 1:
        taps = [src_ref[pl.ds(t, n_out), :] for t in range(3)]
    else:
        taps = [src_ref[pl.ds(t, n_out, stride), :] for t in range(3)]
    cols = jnp.concatenate(taps, axis=-1).astype(jnp.bfloat16)    # (n_out, 3*Cin)
    acc = jnp.dot(cols, w_ref[...], preferred_element_type=jnp.float32)
    acc = acc + b_ref[...].astype(jnp.float32)                    # (1, Cout) bcast
    if silu:
        acc = acc * jax.nn.sigmoid(acc)                           # f32 epilogue (v5e-safe)
    return acc


def _rhythm_kernel(x_ref, w1, b1, w2, b2, w3, b3, w4, b4, w5, b5, o_ref,
                   act1, act2, act3, act4, *, tile_l, seq_len):
    i = pl.program_id(1)           # L tile
    t = tile_l
    l_full, l_half = seq_len, seq_len // 2
    g0 = i * t                     # global start of this tile (input resolution)
    g0h = i * (t // 2)             # same, at half resolution
    boundary = jnp.logical_or(i == 0, i == pl.num_programs(1) - 1)

    # layer 1: 2 -> 16, stride 1, SiLU           (outputs at global g0-6 + j)
    h = _conv_im2col(x_ref, w1, b1, stride=1, n_out=t + 9, silu=True)
    _store_act(act1, h, g0 - 6, l_full, boundary)

    # layer 2: 16 -> 64, stride 1, SiLU          (outputs at global g0-5 + j)
    h = _conv_im2col(act1, w2, b2, stride=1, n_out=t + 7, silu=True)
    _store_act(act2, h, g0 - 5, l_full, boundary)

    # layer 3: 64 -> 128, stride 2, SiLU         (half-res, global g0/2-2 + j)
    h = _conv_im2col(act2, w3, b3, stride=2, n_out=t // 2 + 3, silu=True)
    _store_act(act3, h, g0h - 2, l_half, boundary)

    # layer 4: 128 -> 128, stride 1, SiLU        (half-res, global g0/2-1 + j)
    h = _conv_im2col(act3, w4, b4, stride=1, n_out=t // 2 + 1, silu=True)
    _store_act(act4, h, g0h - 1, l_half, boundary)

    # layer 5: 128 -> 192, stride 2, no activation (quarter-res tile output).
    # Store channel-major so the HBM write is lane-dense and the wrapper does
    # not need a separate NLC->NCL transpose pass over the output.
    h = _conv_im2col(act4, w5, b5, stride=2, n_out=t // 4, silu=False)
    o_ref[...] = jnp.transpose(h, (1, 0)).astype(o_ref.dtype)


def rhythm_extractor_forward(x_ncl, params, *, tile_l=2048):
    """x_ncl: (N, 2, L) float32 (PyTorch NCL layout).  Returns (N, 192, L//4)."""
    n, c_in, seq_len = x_ncl.shape
    assert c_in == 2
    # TODO(synk): support L % 4 != 0 (ceil-length outputs of the stride-2 layers).
    assert seq_len % 4 == 0 and seq_len >= 4, "kernel assumes L % 4 == 0"
    l_quart = seq_len // 4

    if seq_len <= tile_l:
        t, num_tiles = seq_len, 1
    else:
        t = tile_l
        # t % 512 == 0 keeps the channel-major output block lane-dense
        # (t_out = t/4 a multiple of 128) and keeps g0 = i*t divisible by 4,
        # which the half-/quarter-resolution mask offsets rely on.
        assert t % 512 == 0, "multi-tile runs require tile_l % 512 == 0"
        num_tiles = -(-seq_len // t)
    t_out = t // 4

    # Layout glue (input is tiny: 2 channels): NCL -> NLC, pad with halos
    # (+ ragged tail), then materialize per-tile overlapping windows so a plain
    # BlockSpec can stream + double-buffer them.
    x_nlc = jnp.transpose(x_ncl, (0, 2, 1)).astype(jnp.float32)
    pad_right = num_tiles * t - seq_len + _HALO_R
    xp = jnp.pad(x_nlc, ((0, 0), (_HALO_L, pad_right), (0, 0)))
    win_idx = (jnp.arange(num_tiles) * t)[:, None] + jnp.arange(t + 11)[None, :]
    x_win = jnp.take(xp, win_idx, axis=1)                 # (N, num_tiles, t+11, 2)

    # Weights -> im2col matrices (3*Cin, Cout) in bf16 (cast once, not per tile);
    # biases -> (1, Cout) f32.
    flat_inputs = [x_win]
    for w, bias in params:
        c_out, c_i, k = w.shape
        w_i2c = jnp.transpose(w, (2, 1, 0)).reshape(k * c_i, c_out)
        flat_inputs.append(w_i2c.astype(jnp.bfloat16))
        flat_inputs.append(bias.reshape(1, c_out).astype(jnp.float32))

    kernel = functools.partial(_rhythm_kernel, tile_l=t, seq_len=seq_len)

    out = pl.pallas_call(
        kernel,
        out_shape=jax.ShapeDtypeStruct((n, 192, num_tiles * t_out), jnp.float32),
        grid=(n, num_tiles),
        in_specs=[pl.BlockSpec((None, None, t + 11, 2), lambda b, i: (b, i, 0, 0))]
        + [pl.BlockSpec(memory_space=pltpu.MemorySpace.VMEM)] * (2 * len(params)),
        out_specs=pl.BlockSpec((None, 192, t_out), lambda b, i: (b, 0, i)),
        scratch_shapes=[
            pltpu.VMEM((t + 9, 16), jnp.bfloat16),        # layer-1 acts (stride-1 reads)
            pltpu.VMEM((t + 7, 64), jnp.float32),         # layer-2 acts (stride-2 reads)
            pltpu.VMEM((t // 2 + 3, 128), jnp.bfloat16),  # layer-3 acts (stride-1 reads)
            pltpu.VMEM((t // 2 + 1, 128), jnp.float32),   # layer-4 acts (stride-2 reads)
        ],
        compiler_params=pltpu.CompilerParams(
            dimension_semantics=("parallel", "parallel"),  # megacore on v7x
            vmem_limit_bytes=32 * 1024 * 1024,             # fits v5e/v6e/v7x
        ),
    )(*flat_inputs)

    return out[:, :, :l_quart]                  # drop the partial-tile tail (NCL layout)


# ---------------------------------------------------------------------------
# Deterministic parameter init (mirrors nn.Conv1d shapes: (Cout, Cin, K))
# ---------------------------------------------------------------------------
def init_params(key):
    params = []
    for (cin, cout, _, _) in _LAYER_CFG:
        key, kw, kb = jax.random.split(key, 3)
        bound = 1.0 / jnp.sqrt(cin * 3.0)
        w = jax.random.uniform(kw, (cout, cin, 3), jnp.float32, -bound, bound)
        b = jax.random.uniform(kb, (cout,), jnp.float32, -bound, bound)
        params.append((w, b))
    return params


# ---------------------------------------------------------------------------
# Pure-JAX reference (f32) for a silent correctness check
# ---------------------------------------------------------------------------
def _reference_forward(x_ncl, params):
    h = x_ncl
    for (w, b), (_, _, stride, silu_after) in zip(params, _LAYER_CFG):
        h = lax.conv_general_dilated(
            h, w, window_strides=(stride,), padding=((1, 1),),
            dimension_numbers=('NCH', 'OIH', 'NCH'))
        h = h + b[None, :, None]
        if silu_after:
            h = h * jax.nn.sigmoid(h)
    return h


if __name__ == "__main__":
    key = jax.random.PRNGKey(0)
    kx, kp = jax.random.split(key)
    params = init_params(kp)

    def check(n, seq_len, tile_l):
        x = jax.random.normal(jax.random.fold_in(kx, seq_len),
                              (n, 2, seq_len), jnp.float32)
        out = jax.block_until_ready(
            rhythm_extractor_forward(x, params, tile_l=tile_l))
        ref = _reference_forward(x, params)
        assert out.shape == (n, 192, seq_len // 4)
        err = float(jnp.max(jnp.abs(out - ref)))
        scale = float(jnp.max(jnp.abs(ref)))
        # bf16 matmul operands vs. pure-f32 reference -> loosened tolerance
        assert err <= 3e-2 * scale + 2e-3, (seq_len, tile_l, err, scale)

    check(2, 16, 2048)     # single tiny tile (the small primary example)
    check(2, 1024, 512)    # two full tiles: multi-tile pipelined path, even grid
    check(2, 1088, 512)    # tiles + ragged tail: halos, boundary masks, tail slice

    print("KERNEL_OK")
</pallas_src>

<mosaic_0001>
module attributes {stable_mosaic.version = 11 : i64} {
  func.func @_rhythm_kernel(%arg0: i32, %arg1: i32, %arg2: memref<1x1x27x2xf32, #tpu.memory_space<vmem>>, %arg3: memref<6x16xbf16, #tpu.memory_space<vmem>>, %arg4: memref<1x16xf32, #tpu.memory_space<vmem>>, %arg5: memref<48x64xbf16, #tpu.memory_space<vmem>>, %arg6: memref<1x64xf32, #tpu.memory_space<vmem>>, %arg7: memref<192x128xbf16, #tpu.memory_space<vmem>>, %arg8: memref<1x128xf32, #tpu.memory_space<vmem>>, %arg9: memref<384x128xbf16, #tpu.memory_space<vmem>>, %arg10: memref<1x128xf32, #tpu.memory_space<vmem>>, %arg11: memref<384x192xbf16, #tpu.memory_space<vmem>>, %arg12: memref<1x192xf32, #tpu.memory_space<vmem>>, %arg13: memref<1x192x4xf32, #tpu.memory_space<vmem>>, %arg14: memref<25x16xbf16, #tpu.memory_space<vmem>>, %arg15: memref<23x64xf32, #tpu.memory_space<vmem>>, %arg16: memref<11x128xbf16, #tpu.memory_space<vmem>>, %arg17: memref<9x128xf32, #tpu.memory_space<vmem>>) attributes {dimension_semantics = [#tpu.dimension_semantics<parallel>, #tpu.dimension_semantics<parallel>], iteration_bounds = array<i64: 2, 1>, scalar_prefetch = 0 : i64, scratch_operands = 4 : i64, tpu.core_type = #tpu.core_type<tc>, window_params = [{transform_indices = @transform_0, window_bounds = array<i64: 1, 1, 27, 2>}, {pipeline_mode = #tpu.pipeline_mode<synchronous>, transform_indices = @transform_1, window_bounds = array<i64: 6, 16>}, {pipeline_mode = #tpu.pipeline_mode<synchronous>, transform_indices = @transform_2, window_bounds = array<i64: 1, 16>}, {pipeline_mode = #tpu.pipeline_mode<synchronous>, transform_indices = @transform_3, window_bounds = array<i64: 48, 64>}, {pipeline_mode = #tpu.pipeline_mode<synchronous>, transform_indices = @transform_4, window_bounds = array<i64: 1, 64>}, {pipeline_mode = #tpu.pipeline_mode<synchronous>, transform_indices = @transform_5, window_bounds = array<i64: 192, 128>}, {pipeline_mode = #tpu.pipeline_mode<synchronous>, transform_indices = @transform_6, window_bounds = array<i64: 1, 128>}, {pipeline_mode = #tpu.pipeline_mode<synchronous>, transform_indices = @transform_7, window_bounds = array<i64: 384, 128>}, {pipeline_mode = #tpu.pipeline_mode<synchronous>, transform_indices = @transform_8, window_bounds = array<i64: 1, 128>}, {pipeline_mode = #tpu.pipeline_mode<synchronous>, transform_indices = @transform_9, window_bounds = array<i64: 384, 192>}, {pipeline_mode = #tpu.pipeline_mode<synchronous>, transform_indices = @transform_10, window_bounds = array<i64: 1, 192>}, {transform_indices = @transform_11, window_bounds = array<i64: 1, 192, 4>}]} {
    %c16_i32 = arith.constant 16 : i32
    %0 = arith.muli %arg1, %c16_i32 : i32
    %c8_i32 = arith.constant 8 : i32
    %1 = arith.muli %arg1, %c8_i32 : i32
    %c0_i32 = arith.constant 0 : i32
    %2 = arith.cmpi eq, %arg1, %c0_i32 : i32
    %c0_i32_0 = arith.constant 0 : i32
    %3 = arith.cmpi eq, %arg1, %c0_i32_0 : i32
    %4 = arith.ori %2, %3 : i1
    %c0 = arith.constant 0 : index
    %c0_1 = arith.constant 0 : index
    %c0_2 = arith.constant 0 : index
    %c0_3 = arith.constant 0 : index
    %5 = vector.load %arg2[%c0, %c0_1, %c0_2, %c0_3] : memref<1x1x27x2xf32, #tpu.memory_space<vmem>>, vector<1x1x25x2xf32>
    %6 = vector.shape_cast %5 : vector<1x1x25x2xf32> to vector<25x2xf32>
    %c0_4 = arith.constant 0 : index
    %c0_5 = arith.constant 0 : index
    %c1 = arith.constant 1 : index
    %c0_6 = arith.constant 0 : index
    %7 = vector.load %arg2[%c0_4, %c0_5, %c1, %c0_6] : memref<1x1x27x2xf32, #tpu.memory_space<vmem>>, vector<1x1x25x2xf32>
    %8 = vector.shape_cast %7 : vector<1x1x25x2xf32> to vector<25x2xf32>
    %c0_7 = arith.constant 0 : index
    %c0_8 = arith.constant 0 : index
    %c2 = arith.constant 2 : index
    %c0_9 = arith.constant 0 : index
    %9 = vector.load %arg2[%c0_7, %c0_8, %c2, %c0_9] : memref<1x1x27x2xf32, #tpu.memory_space<vmem>>, vector<1x1x25x2xf32>
    %10 = vector.shape_cast %9 : vector<1x1x25x2xf32> to vector<25x2xf32>
    %11 = tpu.concatenate %6, %8, %10 in 1 : vector<25x2xf32>, vector<25x2xf32>, vector<25x2xf32> -> vector<25x6xf32>
    %12 = arith.truncf %11 : vector<25x6xf32> to vector<25x6xbf16>
    %c0_10 = arith.constant 0 : index
    %c0_11 = arith.constant 0 : index
    %13 = vector.load %arg3[%c0_10, %c0_11] : memref<6x16xbf16, #tpu.memory_space<vmem>>, vector<6x16xbf16>
    %cst = arith.constant dense<0.000000e+00> : vector<25x16xf32>
    %14 = tpu.matmul %12, %13, %cst {dimension_numbers = #tpu.dot_dimension_numbers<[1], [0], [0], [1], [0, 0, 1, 1], [], []>} : vector<25x6xbf16>, vector<6x16xbf16>, vector<25x16xf32> -> vector<25x16xf32>
    %c0_12 = arith.constant 0 : index
    %c0_13 = arith.constant 0 : index
    %15 = vector.load %arg4[%c0_12, %c0_13] : memref<1x16xf32, #tpu.memory_space<vmem>>, vector<1x16xf32>
    %16 = vector.broadcast %15 : vector<1x16xf32> to vector<25x16xf32>
    %17 = arith.addf %14, %16 : vector<25x16xf32>
    %18 = arith.negf %17 : vector<25x16xf32>
    %19 = math.exp %18 : vector<25x16xf32>
    %cst_14 = arith.constant 1.000000e+00 : f32
    %20 = vector.broadcast %cst_14 : f32 to vector<25x16xf32>
    %21 = arith.addf %20, %19 : vector<25x16xf32>
    %22 = arith.divf %20, %21 : vector<25x16xf32>
    %23 = arith.mulf %17, %22 : vector<25x16xf32>
    %c6_i32 = arith.constant 6 : i32
    %24 = arith.subi %0, %c6_i32 : i32
    %25 = arith.extui %4 : i1 to i32
    %c0_i32_15 = arith.constant 0 : i32
    %26 = arith.cmpi ne, %25, %c0_i32_15 : i32
    scf.if %26 {
      %108 = tpu.iota {dimensions = array<i32: 0>} : vector<25x1xi32>
      %109 = vector.broadcast %24 : i32 to vector<25x1xi32>
      %110 = arith.addi %109, %108 : vector<25x1xi32>
      %c0_i32_76 = arith.constant 0 : i32
      %111 = vector.broadcast %c0_i32_76 : i32 to vector<25x1xi32>
      %112 = arith.cmpi sge, %110, %111 : vector<25x1xi32>
      %c16_i32_77 = arith.constant 16 : i32
      %113 = vector.broadcast %c16_i32_77 : i32 to vector<25x1xi32>
      %114 = arith.cmpi slt, %110, %113 : vector<25x1xi32>
      %115 = arith.andi %112, %114 : vector<25x1xi1>
      %cst_78 = arith.constant 0.000000e+00 : f32
      %116 = vector.shape_cast %115 : vector<25x1xi1> to vector<25x1xi1>
      %117 = vector.broadcast %116 : vector<25x1xi1> to vector<25x16xi1>
      %118 = vector.broadcast %cst_78 : f32 to vector<25x16xf32>
      %119 = arith.select %117, %23, %118 : vector<25x16xi1>, vector<25x16xf32>
      %120 = arith.truncf %119 : vector<25x16xf32> to vector<25x16xbf16>
      %c0_79 = arith.constant 0 : index
      %c0_80 = arith.constant 0 : index
      %121 = vector.load %arg14[%c0_79, %c0_80] : memref<25x16xbf16, #tpu.memory_space<vmem>>, vector<25x16xbf16>
      tpu.vector_store %arg14[%c0_79, %c0_80], %120 {strides = array<i32>} : memref<25x16xbf16, #tpu.memory_space<vmem>>, vector<25x16xbf16>,
    } else {
    }
    %true = arith.constant true
    %27 = arith.xori %4, %true : i1
    %28 = arith.extui %27 : i1 to i32
    %c0_i32_16 = arith.constant 0 : i32
    %29 = arith.cmpi ne, %28, %c0_i32_16 : i32
    scf.if %29 {
      %108 = arith.truncf %23 : vector<25x16xf32> to vector<25x16xbf16>
      %c0_76 = arith.constant 0 : index
      %c0_77 = arith.constant 0 : index
      %109 = vector.load %arg14[%c0_76, %c0_77] : memref<25x16xbf16, #tpu.memory_space<vmem>>, vector<25x16xbf16>
      tpu.vector_store %arg14[%c0_76, %c0_77], %108 {strides = array<i32>} : memref<25x16xbf16, #tpu.memory_space<vmem>>, vector<25x16xbf16>,
    } else {
    }
    %c0_17 = arith.constant 0 : index
    %c0_18 = arith.constant 0 : index
    %30 = vector.load %arg14[%c0_17, %c0_18] : memref<25x16xbf16, #tpu.memory_space<vmem>>, vector<23x16xbf16>
    %c1_19 = arith.constant 1 : index
    %c0_20 = arith.constant 0 : index
    %31 = vector.load %arg14[%c1_19, %c0_20] : memref<25x16xbf16, #tpu.memory_space<vmem>>, vector<23x16xbf16>
    %c2_21 = arith.constant 2 : index
    %c0_22 = arith.constant 0 : index
    %32 = vector.load %arg14[%c2_21, %c0_22] : memref<25x16xbf16, #tpu.memory_space<vmem>>, vector<23x16xbf16>
    %33 = tpu.concatenate %30, %31, %32 in 1 : vector<23x16xbf16>, vector<23x16xbf16>, vector<23x16xbf16> -> vector<23x48xbf16>
    %c0_23 = arith.constant 0 : index
    %c0_24 = arith.constant 0 : index
    %34 = vector.load %arg5[%c0_23, %c0_24] : memref<48x64xbf16, #tpu.memory_space<vmem>>, vector<48x64xbf16>
    %cst_25 = arith.constant dense<0.000000e+00> : vector<23x64xf32>
    %35 = tpu.matmul %33, %34, %cst_25 {dimension_numbers = #tpu.dot_dimension_numbers<[1], [0], [0], [1], [0, 0, 1, 1], [], []>} : vector<23x48xbf16>, vector<48x64xbf16>, vector<23x64xf32> -> vector<23x64xf32>
    %c0_26 = arith.constant 0 : index
    %c0_27 = arith.constant 0 : index
    %36 = vector.load %arg6[%c0_26, %c0_27] : memref<1x64xf32, #tpu.memory_space<vmem>>, vector<1x64xf32>
    %37 = vector.broadcast %36 : vector<1x64xf32> to vector<23x64xf32>
    %38 = arith.addf %35, %37 : vector<23x64xf32>
    %39 = arith.negf %38 : vector<23x64xf32>
    %40 = math.exp %39 : vector<23x64xf32>
    %cst_28 = arith.constant 1.000000e+00 : f32
    %41 = vector.broadcast %cst_28 : f32 to vector<23x64xf32>
    %42 = arith.addf %41, %40 : vector<23x64xf32>
    %43 = arith.divf %41, %42 : vector<23x64xf32>
    %44 = arith.mulf %38, %43 : vector<23x64xf32>
    %c5_i32 = arith.constant 5 : i32
    %45 = arith.subi %0, %c5_i32 : i32
    %46 = arith.extui %4 : i1 to i32
    %c0_i32_29 = arith.constant 0 : i32
    %47 = arith.cmpi ne, %46, %c0_i32_29 : i32
    scf.if %47 {
      %108 = tpu.iota {dimensions = array<i32: 0>} : vector<23x1xi32>
      %109 = vector.broadcast %45 : i32 to vector<23x1xi32>
      %110 = arith.addi %109, %108 : vector<23x1xi32>
      %c0_i32_76 = arith.constant 0 : i32
      %111 = vector.broadcast %c0_i32_76 : i32 to vector<23x1xi32>
      %112 = arith.cmpi sge, %110, %111 : vector<23x1xi32>
      %c16_i32_77 = arith.constant 16 : i32
      %113 = vector.broadcast %c16_i32_77 : i32 to vector<23x1xi32>
      %114 = arith.cmpi slt, %110, %113 : vector<23x1xi32>
      %115 = arith.andi %112, %114 : vector<23x1xi1>
      %cst_78 = arith.constant 0.000000e+00 : f32
      %116 = vector.shape_cast %115 : vector<23x1xi1> to vector<23x1xi1>
      %117 = vector.broadcast %116 : vector<23x1xi1> to vector<23x64xi1>
      %118 = vector.broadcast %cst_78 : f32 to vector<23x64xf32>
      %119 = arith.select %117, %44, %118 : vector<23x64xi1>, vector<23x64xf32>
      %c0_79 = arith.constant 0 : index
      %c0_80 = arith.constant 0 : index
      %120 = vector.load %arg15[%c0_79, %c0_80] : memref<23x64xf32, #tpu.memory_space<vmem>>, vector<23x64xf32>
      tpu.vector_store %arg15[%c0_79, %c0_80], %119 {strides = array<i32>} : memref<23x64xf32, #tpu.memory_space<vmem>>, vector<23x64xf32>,
    } else {
    }
    %true_30 = arith.constant true
    %48 = arith.xori %4, %true_30 : i1
    %49 = arith.extui %48 : i1 to i32
    %c0_i32_31 = arith.constant 0 : i32
    %50 = arith.cmpi ne, %49, %c0_i32_31 : i32
    scf.if %50 {
      %c0_76 = arith.constant 0 : index
      %c0_77 = arith.constant 0 : index
      %108 = vector.load %arg15[%c0_76, %c0_77] : memref<23x64xf32, #tpu.memory_space<vmem>>, vector<23x64xf32>
      tpu.vector_store %arg15[%c0_76, %c0_77], %44 {strides = array<i32>} : memref<23x64xf32, #tpu.memory_space<vmem>>, vector<23x64xf32>,
    } else {
    }
    %c0_32 = arith.constant 0 : index
    %c0_33 = arith.constant 0 : index
    %51 = tpu.strided_load %arg15[%c0_32, %c0_33] {strides = array<i32: 2, 1>} : memref<23x64xf32, #tpu.memory_space<vmem>>, vector<11x64xf32>
    %c1_34 = arith.constant 1 : index
    %c0_35 = arith.constant 0 : index
    %52 = tpu.strided_load %arg15[%c1_34, %c0_35] {strides = array<i32: 2, 1>} : memref<23x64xf32, #tpu.memory_space<vmem>>, vector<11x64xf32>
    %c2_36 = arith.constant 2 : index
    %c0_37 = arith.constant 0 : index
    %53 = tpu.strided_load %arg15[%c2_36, %c0_37] {strides = array<i32: 2, 1>} : memref<23x64xf32, #tpu.memory_space<vmem>>, vector<11x64xf32>
    %54 = tpu.concatenate %51, %52, %53 in 1 : vector<11x64xf32>, vector<11x64xf32>, vector<11x64xf32> -> vector<11x192xf32>
    %55 = arith.truncf %54 : vector<11x192xf32> to vector<11x192xbf16>
    %c0_38 = arith.constant 0 : index
    %c0_39 = arith.constant 0 : index
    %56 = vector.load %arg7[%c0_38, %c0_39] : memref<192x128xbf16, #tpu.memory_space<vmem>>, vector<192x128xbf16>
    %cst_40 = arith.constant dense<0.000000e+00> : vector<11x128xf32>
    %57 = tpu.matmul %55, %56, %cst_40 {dimension_numbers = #tpu.dot_dimension_numbers<[1], [0], [0], [1], [0, 0, 1, 1], [], []>} : vector<11x192xbf16>, vector<192x128xbf16>, vector<11x128xf32> -> vector<11x128xf32>
    %c0_41 = arith.constant 0 : index
    %c0_42 = arith.constant 0 : index
    %58 = vector.load %arg8[%c0_41, %c0_42] : memref<1x128xf32, #tpu.memory_space<vmem>>, vector<1x128xf32>
    %59 = vector.broadcast %58 : vector<1x128xf32> to vector<11x128xf32>
    %60 = arith.addf %57, %59 : vector<11x128xf32>
    %61 = arith.negf %60 : vector<11x128xf32>
    %62 = math.exp %61 : vector<11x128xf32>
    %cst_43 = arith.constant 1.000000e+00 : f32
    %63 = vector.broadcast %cst_43 : f32 to vector<11x128xf32>
    %64 = arith.addf %63, %62 : vector<11x128xf32>
    %65 = arith.divf %63, %64 : vector<11x128xf32>
    %66 = arith.mulf %60, %65 : vector<11x128xf32>
    %c2_i32 = arith.constant 2 : i32
    %67 = arith.subi %1, %c2_i32 : i32
    %68 = arith.extui %4 : i1 to i32
    %c0_i32_44 = arith.constant 0 : i32
    %69 = arith.cmpi ne, %68, %c0_i32_44 : i32
    scf.if %69 {
      %108 = tpu.iota {dimensions = array<i32: 0>} : vector<11x1xi32>
      %109 = vector.broadcast %67 : i32 to vector<11x1xi32>
      %110 = arith.addi %109, %108 : vector<11x1xi32>
      %c0_i32_76 = arith.constant 0 : i32
      %111 = vector.broadcast %c0_i32_76 : i32 to vector<11x1xi32>
      %112 = arith.cmpi sge, %110, %111 : vector<11x1xi32>
      %c8_i32_77 = arith.constant 8 : i32
      %113 = vector.broadcast %c8_i32_77 : i32 to vector<11x1xi32>
      %114 = arith.cmpi slt, %110, %113 : vector<11x1xi32>
      %115 = arith.andi %112, %114 : vector<11x1xi1>
      %cst_78 = arith.constant 0.000000e+00 : f32
      %116 = vector.shape_cast %115 : vector<11x1xi1> to vector<11x1xi1>
      %117 = vector.broadcast %116 : vector<11x1xi1> to vector<11x128xi1>
      %118 = vector.broadcast %cst_78 : f32 to vector<11x128xf32>
      %119 = arith.select %117, %66, %118 : vector<11x128xi1>, vector<11x128xf32>
      %120 = arith.truncf %119 : vector<11x128xf32> to vector<11x128xbf16>
      %c0_79 = arith.constant 0 : index
      %c0_80 = arith.constant 0 : index
      %121 = vector.load %arg16[%c0_79, %c0_80] : memref<11x128xbf16, #tpu.memory_space<vmem>>, vector<11x128xbf16>
      tpu.vector_store %arg16[%c0_79, %c0_80], %120 {strides = array<i32>} : memref<11x128xbf16, #tpu.memory_space<vmem>>, vector<11x128xbf16>,
    } else {
    }
    %true_45 = arith.constant true
    %70 = arith.xori %4, %true_45 : i1
    %71 = arith.extui %70 : i1 to i32
    %c0_i32_46 = arith.constant 0 : i32
    %72 = arith.cmpi ne, %71, %c0_i32_46 : i32
    scf.if %72 {
      %108 = arith.truncf %66 : vector<11x128xf32> to vector<11x128xbf16>
      %c0_76 = arith.constant 0 : index
      %c0_77 = arith.constant 0 : index
      %109 = vector.load %arg16[%c0_76, %c0_77] : memref<11x128xbf16, #tpu.memory_space<vmem>>, vector<11x128xbf16>
      tpu.vector_store %arg16[%c0_76, %c0_77], %108 {strides = array<i32>} : memref<11x128xbf16, #tpu.memory_space<vmem>>, vector<11x128xbf16>,
    } else {
    }
    %c0_47 = arith.constant 0 : index
    %c0_48 = arith.constant 0 : index
    %73 = vector.load %arg16[%c0_47, %c0_48] : memref<11x128xbf16, #tpu.memory_space<vmem>>, vector<9x128xbf16>
    %c1_49 = arith.constant 1 : index
    %c0_50 = arith.constant 0 : index
    %74 = vector.load %arg16[%c1_49, %c0_50] : memref<11x128xbf16, #tpu.memory_space<vmem>>, vector<9x128xbf16>
    %c2_51 = arith.constant 2 : index
    %c0_52 = arith.constant 0 : index
    %75 = vector.load %arg16[%c2_51, %c0_52] : memref<11x128xbf16, #tpu.memory_space<vmem>>, vector<9x128xbf16>
    %76 = tpu.concatenate %73, %74, %75 in 1 : vector<9x128xbf16>, vector<9x128xbf16>, vector<9x128xbf16> -> vector<9x384xbf16>
    %c0_53 = arith.constant 0 : index
    %c0_54 = arith.constant 0 : index
    %77 = vector.load %arg9[%c0_53, %c0_54] : memref<384x128xbf16, #tpu.memory_space<vmem>>, vector<384x128xbf16>
    %cst_55 = arith.constant dense<0.000000e+00> : vector<9x128xf32>
    %78 = tpu.matmul %76, %77, %cst_55 {dimension_numbers = #tpu.dot_dimension_numbers<[1], [0], [0], [1], [0, 0, 1, 1], [], []>} : vector<9x384xbf16>, vector<384x128xbf16>, vector<9x128xf32> -> vector<9x128xf32>
    %c0_56 = arith.constant 0 : index
    %c0_57 = arith.constant 0 : index
    %79 = vector.load %arg10[%c0_56, %c0_57] : memref<1x128xf32, #tpu.memory_space<vmem>>, vector<1x128xf32>
    %80 = vector.broadcast %79 : vector<1x128xf32> to vector<9x128xf32>
    %81 = arith.addf %78, %80 : vector<9x128xf32>
    %82 = arith.negf %81 : vector<9x128xf32>
    %83 = math.exp %82 : vector<9x128xf32>
    %cst_58 = arith.constant 1.000000e+00 : f32
    %84 = vector.broadcast %cst_58 : f32 to vector<9x128xf32>
    %85 = arith.addf %84, %83 : vector<9x128xf32>
    %86 = arith.divf %84, %85 : vector<9x128xf32>
    %87 = arith.mulf %81, %86 : vector<9x128xf32>
    %c1_i32 = arith.constant 1 : i32
    %88 = arith.subi %1, %c1_i32 : i32
    %89 = arith.extui %4 : i1 to i32
    %c0_i32_59 = arith.constant 0 : i32
    %90 = arith.cmpi ne, %89, %c0_i32_59 : i32
    scf.if %90 {
      %108 = tpu.iota {dimensions = array<i32: 0>} : vector<9x1xi32>
      %109 = vector.broadcast %88 : i32 to vector<9x1xi32>
      %110 = arith.addi %109, %108 : vector<9x1xi32>
      %c0_i32_76 = arith.constant 0 : i32
      %111 = vector.broadcast %c0_i32_76 : i32 to vector<9x1xi32>
      %112 = arith.cmpi sge, %110, %111 : vector<9x1xi32>
      %c8_i32_77 = arith.constant 8 : i32
      %113 = vector.broadcast %c8_i32_77 : i32 to vector<9x1xi32>
      %114 = arith.cmpi slt, %110, %113 : vector<9x1xi32>
      %115 = arith.andi %112, %114 : vector<9x1xi1>
      %cst_78 = arith.constant 0.000000e+00 : f32
      %116 = vector.shape_cast %115 : vector<9x1xi1> to vector<9x1xi1>
      %117 = vector.broadcast %116 : vector<9x1xi1> to vector<9x128xi1>
      %118 = vector.broadcast %cst_78 : f32 to vector<9x128xf32>
      %119 = arith.select %117, %87, %118 : vector<9x128xi1>, vector<9x128xf32>
      %c0_79 = arith.constant 0 : index
      %c0_80 = arith.constant 0 : index
      %120 = vector.load %arg17[%c0_79, %c0_80] : memref<9x128xf32, #tpu.memory_space<vmem>>, vector<9x128xf32>
      tpu.vector_store %arg17[%c0_79, %c0_80], %119 {strides = array<i32>} : memref<9x128xf32, #tpu.memory_space<vmem>>, vector<9x128xf32>,
    } else {
    }
    %true_60 = arith.constant true
    %91 = arith.xori %4, %true_60 : i1
    %92 = arith.extui %91 : i1 to i32
    %c0_i32_61 = arith.constant 0 : i32
    %93 = arith.cmpi ne, %92, %c0_i32_61 : i32
    scf.if %93 {
      %c0_76 = arith.constant 0 : index
      %c0_77 = arith.constant 0 : index
      %108 = vector.load %arg17[%c0_76, %c0_77] : memref<9x128xf32, #tpu.memory_space<vmem>>, vector<9x128xf32>
      tpu.vector_store %arg17[%c0_76, %c0_77], %87 {strides = array<i32>} : memref<9x128xf32, #tpu.memory_space<vmem>>, vector<9x128xf32>,
    } else {
    }
    %c0_62 = arith.constant 0 : index
    %c0_63 = arith.constant 0 : index
    %94 = tpu.strided_load %arg17[%c0_62, %c0_63] {strides = array<i32: 2, 1>} : memref<9x128xf32, #tpu.memory_space<vmem>>, vector<4x128xf32>
    %c1_64 = arith.constant 1 : index
    %c0_65 = arith.constant 0 : index
    %95 = tpu.strided_load %arg17[%c1_64, %c0_65] {strides = array<i32: 2, 1>} : memref<9x128xf32, #tpu.memory_space<vmem>>, vector<4x128xf32>
    %c2_66 = arith.constant 2 : index
    %c0_67 = arith.constant 0 : index
    %96 = tpu.strided_load %arg17[%c2_66, %c0_67] {strides = array<i32: 2, 1>} : memref<9x128xf32, #tpu.memory_space<vmem>>, vector<4x128xf32>
    %97 = tpu.concatenate %94, %95, %96 in 1 : vector<4x128xf32>, vector<4x128xf32>, vector<4x128xf32> -> vector<4x384xf32>
    %98 = arith.truncf %97 : vector<4x384xf32> to vector<4x384xbf16>
    %c0_68 = arith.constant 0 : index
    %c0_69 = arith.constant 0 : index
    %99 = vector.load %arg11[%c0_68, %c0_69] : memref<384x192xbf16, #tpu.memory_space<vmem>>, vector<384x192xbf16>
    %cst_70 = arith.constant dense<0.000000e+00> : vector<4x192xf32>
    %100 = tpu.matmul %98, %99, %cst_70 {dimension_numbers = #tpu.dot_dimension_numbers<[1], [0], [0], [1], [0, 0, 1, 1], [], []>} : vector<4x384xbf16>, vector<384x192xbf16>, vector<4x192xf32> -> vector<4x192xf32>
    %c0_71 = arith.constant 0 : index
    %c0_72 = arith.constant 0 : index
    %101 = vector.load %arg12[%c0_71, %c0_72] : memref<1x192xf32, #tpu.memory_space<vmem>>, vector<1x192xf32>
    %102 = vector.broadcast %101 : vector<1x192xf32> to vector<4x192xf32>
    %103 = arith.addf %100, %102 : vector<4x192xf32>
    %104 = tpu.transpose %103, [1, 0] : vector<4x192xf32> -> vector<192x4xf32>
    %c0_73 = arith.constant 0 : index
    %c0_74 = arith.constant 0 : index
    %c0_75 = arith.constant 0 : index
    %105 = vector.load %arg13[%c0_73, %c0_74, %c0_75] : memref<1x192x4xf32, #tpu.memory_space<vmem>>, vector<1x192x4xf32>
    %106 = vector.shape_cast %105 : vector<1x192x4xf32> to vector<192x4xf32>
    %107 = vector.shape_cast %104 : vector<192x4xf32> to vector<1x192x4xf32>
    tpu.vector_store %arg13[%c0_73, %c0_74, %c0_75], %107 {strides = array<i32>} : memref<1x192x4xf32, #tpu.memory_space<vmem>>, vector<1x192x4xf32>,
    return
  }
  func.func @transform_0(%arg0: i32, %arg1: i32) -> (i32, i32, i32, i32) {
    %c0_i32 = arith.constant 0 : i32
    %c0_i32_0 = arith.constant 0 : i32
    %c0_i32_1 = arith.constant 0 : i32
    return %arg0, %arg1, %c0_i32, %c0_i32_0 : i32, i32, i32, i32
  }
  func.func @transform_1(%arg0: i32, %arg1: i32) -> (i32, i32) {
    %c0_i32 = arith.constant 0 : i32
    %c0_i32_0 = arith.constant 0 : i32
    %c0_i32_1 = arith.constant 0 : i32
    return %c0_i32, %c0_i32_0 : i32, i32
  }
  func.func @transform_2(%arg0: i32, %arg1: i32) -> (i32, i32) {
    %c0_i32 = arith.constant 0 : i32
    %c0_i32_0 = arith.constant 0 : i32
    %c0_i32_1 = arith.constant 0 : i32
    return %c0_i32, %c0_i32_0 : i32, i32
  }
  func.func @transform_3(%arg0: i32, %arg1: i32) -> (i32, i32) {
    %c0_i32 = arith.constant 0 : i32
    %c0_i32_0 = arith.constant 0 : i32
    %c0_i32_1 = arith.constant 0 : i32
    return %c0_i32, %c0_i32_0 : i32, i32
  }
  func.func @transform_4(%arg0: i32, %arg1: i32) -> (i32, i32) {
    %c0_i32 = arith.constant 0 : i32
    %c0_i32_0 = arith.constant 0 : i32
    %c0_i32_1 = arith.constant 0 : i32
    return %c0_i32, %c0_i32_0 : i32, i32
  }
  func.func @transform_5(%arg0: i32, %arg1: i32) -> (i32, i32) {
    %c0_i32 = arith.constant 0 : i32
    %c0_i32_0 = arith.constant 0 : i32
    %c0_i32_1 = arith.constant 0 : i32
    return %c0_i32, %c0_i32_0 : i32, i32
  }
  func.func @transform_6(%arg0: i32, %arg1: i32) -> (i32, i32) {
    %c0_i32 = arith.constant 0 : i32
    %c0_i32_0 = arith.constant 0 : i32
    %c0_i32_1 = arith.constant 0 : i32
    return %c0_i32, %c0_i32_0 : i32, i32
  }
  func.func @transform_7(%arg0: i32, %arg1: i32) -> (i32, i32) {
    %c0_i32 = arith.constant 0 : i32
    %c0_i32_0 = arith.constant 0 : i32
    %c0_i32_1 = arith.constant 0 : i32
    return %c0_i32, %c0_i32_0 : i32, i32
  }
  func.func @transform_8(%arg0: i32, %arg1: i32) -> (i32, i32) {
    %c0_i32 = arith.constant 0 : i32
    %c0_i32_0 = arith.constant 0 : i32
    %c0_i32_1 = arith.constant 0 : i32
    return %c0_i32, %c0_i32_0 : i32, i32
  }
  func.func @transform_9(%arg0: i32, %arg1: i32) -> (i32, i32) {
    %c0_i32 = arith.constant 0 : i32
    %c0_i32_0 = arith.constant 0 : i32
    %c0_i32_1 = arith.constant 0 : i32
    return %c0_i32, %c0_i32_0 : i32, i32
  }
  func.func @transform_10(%arg0: i32, %arg1: i32) -> (i32, i32) {
    %c0_i32 = arith.constant 0 : i32
    %c0_i32_0 = arith.constant 0 : i32
    %c0_i32_1 = arith.constant 0 : i32
    return %c0_i32, %c0_i32_0 : i32, i32
  }
  func.func @transform_11(%arg0: i32, %arg1: i32) -> (i32, i32, i32) {
    %c0_i32 = arith.constant 0 : i32
    %c0_i32_0 = arith.constant 0 : i32
    return %arg0, %c0_i32, %arg1 : i32, i32, i32
  }
}

</mosaic_0001>

<llo_original>
// kernel: tpu_custom_call.1
$region0: #{tpu_custom_call.1}
  #allocation0 [shape = 'u32[]', space=smem, size = 0x4, offset = 0x4, fixed_abs, tag = 'smem constant byte address 0x4 - core index']
  #allocation1 [shape = 'u32[144,128]{1,0:T(1,128)}', space=vmem, size = 0x12000, scoped, tag = 'internal scratch']
  #allocation2 [shape = 'bf16[25,16]{1,0:T(8,128)(2,1)}', space=vmem, size = 0x2000, scoped, tag = 'scratch operand']
  #allocation3 [shape = 'f32[23,64]{1,0:T(8,128)}', space=vmem, size = 0x3000, scoped, tag = 'scratch operand']
  #allocation4 [shape = 'bf16[11,128]{1,0:T(8,128)(2,1)}', space=vmem, size = 0x1000, scoped, tag = 'scratch operand']
  #allocation5 [shape = 'f32[9,128]{1,0:T(8,128)}', space=vmem, size = 0x2000, scoped, tag = 'scratch operand']
  %s0 = inlined_call_operand.vmem [shape: f32[2,1,27,2], index: 0, kind: input, shape index: {}]
  %s1 = inlined_call_operand.vmem [shape: bf16[6,16], index: 1, kind: input, shape index: {}]
  %s2 = inlined_call_operand.vmem [shape: f32[1,16], index: 2, kind: input, shape index: {}]
  %s3 = inlined_call_operand.vmem [shape: bf16[48,64], index: 3, kind: input, shape index: {}]
  %s4 = inlined_call_operand.vmem [shape: f32[1,64], index: 4, kind: input, shape index: {}]
  %s5 = inlined_call_operand.vmem [shape: bf16[192,128], index: 5, kind: input, shape index: {}]
  %s6 = inlined_call_operand.vmem [shape: f32[1,128], index: 6, kind: input, shape index: {}]
  %s7 = inlined_call_operand.vmem [shape: bf16[384,128], index: 7, kind: input, shape index: {}]
  %s8 = inlined_call_operand.vmem [shape: f32[1,128], index: 8, kind: input, shape index: {}]
  %s9 = inlined_call_operand.vmem [shape: bf16[384,192], index: 9, kind: input, shape index: {}]
  %s10 = inlined_call_operand.vmem [shape: f32[1,192], index: 10, kind: input, shape index: {}]
  %s11 = inlined_call_operand.vmem [shape: f32[2,192,4], index: 11, kind: output, shape index: {}]
  %s12 = sld [smem:[#allocation0]]
  $region109: #{tpu_custom_call.1} parent=0
    _
  %s14 = ssub.s32 1, %s12
  %s15 = scalar_select 0, %s14, %s12
  loop: start=0, step=1, limit=4
  $region2: #{tpu_custom_call.1} parent=0 // loop_pre_header
    _
  $region3: #{tpu_custom_call.1} parent=0 // loop_header
    %s17 = sphi 0, %s21
    %p18 = scmp.ge.s32.totalorder %s17, 4
    %s24 = sphi 0, %s36
    %s25 = sphi 0, %s32
    %s26 = sphi 0, %s24
    %s27 = sphi 0, %s25
    %s28 = sphi 0, %s26
    %s29 = sphi 0, %s27
    %s41 = sphi 0, %s43
    %s44 = sphi 0, %s41
    %s45 = sphi 0, %s44
    %s61 = sphi 0, %s45
    %s65 = sphi 0, %s65
    %s67 = sphi 0, %s65
    %s68 = sphi 0, %s67
    %s82 = sphi 0, %s68
    %s86 = sphi 0, %s86
    %s88 = sphi 0, %s86
    %s89 = sphi 0, %s88
    %s103 = sphi 0, %s89
    %s107 = sphi 0, %s107
    %s109 = sphi 0, %s107
    %s110 = sphi 0, %s109
    %s124 = sphi 0, %s110
    %s128 = sphi 0, %s128
    %s130 = sphi 0, %s128
    %s131 = sphi 0, %s130
    %s145 = sphi 0, %s131
    %s149 = sphi 0, %s149
    %s151 = sphi 0, %s149
    %s152 = sphi 0, %s151
    %s166 = sphi 0, %s152
    %s170 = sphi 0, %s170
    %s172 = sphi 0, %s170
    %s173 = sphi 0, %s172
    %s187 = sphi 0, %s173
    %s191 = sphi 0, %s191
    %s193 = sphi 0, %s191
    %s194 = sphi 0, %s193
    %s208 = sphi 0, %s194
    %s212 = sphi 0, %s212
    %s214 = sphi 0, %s212
    %s215 = sphi 0, %s214
    %s229 = sphi 0, %s215
    %s233 = sphi 0, %s233
    %s235 = sphi 0, %s233
    %s236 = sphi 0, %s235
    %s250 = sphi 0, %s236
    %s254 = sphi 0, %s254
    %s256 = sphi 0, %s254
    %s257 = sphi 0, %s256
    %s271 = sphi 0, %s257
    %s279 = sphi 0, %s281
    %s282 = sphi 0, %s279
    %s283 = sphi 0, %s282
    %s299 = sphi 0, %s283
  $region4: #{tpu_custom_call.1} parent=0 // loop_header_branch
    %20 = sbr.rel (%p18) target = $region8
  $region5: #{tpu_custom_call.1} parent=0 // loop_body
    %s22 = ssub.s32 %s17, 1
    %s23 = ssub.s32 %s17, 2
    %s30 = sadd.s32 1, %s25
    %p31 = scmp.ge.s32.totalorder %s30, 1
    %s32 = scalar_select %p31, 0, %s30
    %s33 = sadd.s32 1, %s24
    %s34 = scalar_select %p31, %s33, %s24
    %p35 = scmp.ge.s32.totalorder %s34, 2
    %s36 = scalar_select %p35, 0, %s34
    %s37 = ssub.s32 %s24, %s36
    %s38 = ssub.s32 %s25, %s32
    %s39 = sor.u32 %s37, %s38
    %p40 = scmp.eq.s32.totalorder %s39, 0
    %s42 = sadd.s32 %s41, 1
    %s43 = scalar_select %p40, %s41, %s42
    %p46 = pneg %p40
    %p47 = scmp.eq.s32.totalorder %s17, 1
    %p48 = por %p46, %p47
    %p49 = scmp.ne.s32.totalorder %s41, %s44
    %p50 = scmp.eq.s32.totalorder %s17, 0
    %p51 = por %p49, %p50
    %p52 = scmp.ne.s32.totalorder %s41, %s44
    %p53 = scmp.eq.s32.totalorder %s22, 1
    %p54 = por %p52, %p53
    %p55 = scmp.ne.s32.totalorder %s44, %s45
    %p56 = scmp.eq.s32.totalorder %s22, 0
    %p57 = por %p55, %p56
    %p58 = scmp.ne.s32.totalorder %s44, %s45
    %p59 = scmp.eq.s32.totalorder %s23, 1
    %p60 = por %p58, %p59
    %p62 = scmp.ne.s32.totalorder %s45, %s61
    %p63 = scmp.eq.s32.totalorder %s23, 0
    %p64 = por %p62, %p63
    %s66 = sadd.s32 %s65, 1
    %p69 = scmp.eq.s32.totalorder %s17, 1
    %p70 = scmp.ne.s32.totalorder %s65, %s67
    %p71 = scmp.eq.s32.totalorder %s17, 0
    %p72 = por %p70, %p71
    %p73 = scmp.ne.s32.totalorder %s65, %s67
    %p74 = scmp.eq.s32.totalorder %s22, 1
    %p75 = por %p73, %p74
    %p76 = scmp.ne.s32.totalorder %s67, %s68
    %p77 = scmp.eq.s32.totalorder %s22, 0
    %p78 = por %p76, %p77
    %p79 = scmp.ne.s32.totalorder %s67, %s68
    %p80 = scmp.eq.s32.totalorder %s23, 1
    %p81 = por %p79, %p80
    %p83 = scmp.ne.s32.totalorder %s68, %s82
    %p84 = scmp.eq.s32.totalorder %s23, 0
    %p85 = por %p83, %p84
    %s87 = sadd.s32 %s86, 1
    %p90 = scmp.eq.s32.totalorder %s17, 1
    %p91 = scmp.ne.s32.totalorder %s86, %s88
    %p92 = scmp.eq.s32.totalorder %s17, 0
    %p93 = por %p91, %p92
    %p94 = scmp.ne.s32.totalorder %s86, %s88
    %p95 = scmp.eq.s32.totalorder %s22, 1
    %p96 = por %p94, %p95
    %p97 = scmp.ne.s32.totalorder %s88, %s89
    %p98 = scmp.eq.s32.totalorder %s22, 0
    %p99 = por %p97, %p98
    %p100 = scmp.ne.s32.totalorder %s88, %s89
    %p101 = scmp.eq.s32.totalorder %s23, 1
    %p102 = por %p100, %p101
    %p104 = scmp.ne.s32.totalorder %s89, %s103
    %p105 = scmp.eq.s32.totalorder %s23, 0
    %p106 = por %p104, %p105
    %s108 = sadd.s32 %s107, 1
    %p111 = scmp.eq.s32.totalorder %s17, 1
    %p112 = scmp.ne.s32.totalorder %s107, %s109
    %p113 = scmp.eq.s32.totalorder %s17, 0
    %p114 = por %p112, %p113
    %p115 = scmp.ne.s32.totalorder %s107, %s109
    %p116 = scmp.eq.s32.totalorder %s22, 1
    %p117 = por %p115, %p116
    %p118 = scmp.ne.s32.totalorder %s109, %s110
    %p119 = scmp.eq.s32.totalorder %s22, 0
    %p120 = por %p118, %p119
    %p121 = scmp.ne.s32.totalorder %s109, %s110
    %p122 = scmp.eq.s32.totalorder %s23, 1
    %p123 = por %p121, %p122
    %p125 = scmp.ne.s32.totalorder %s110, %s124
    %p126 = scmp.eq.s32.totalorder %s23, 0
    %p127 = por %p125, %p126
    %s129 = sadd.s32 %s128, 1
    %p132 = scmp.eq.s32.totalorder %s17, 1
    %p133 = scmp.ne.s32.totalorder %s128, %s130
    %p134 = scmp.eq.s32.totalorder %s17, 0
    %p135 = por %p133, %p134
    %p136 = scmp.ne.s32.totalorder %s128, %s130
    %p137 = scmp.eq.s32.totalorder %s22, 1
    %p138 = por %p136, %p137
    %p139 = scmp.ne.s32.totalorder %s130, %s131
    %p140 = scmp.eq.s32.totalorder %s22, 0
    %p141 = por %p139, %p140
    %p142 = scmp.ne.s32.totalorder %s130, %s131
    %p143 = scmp.eq.s32.totalorder %s23, 1
    %p144 = por %p142, %p143
    %p146 = scmp.ne.s32.totalorder %s131, %s145
    %p147 = scmp.eq.s32.totalorder %s23, 0
    %p148 = por %p146, %p147
    %s150 = sadd.s32 %s149, 1
    %p153 = scmp.eq.s32.totalorder %s17, 1
    %p154 = scmp.ne.s32.totalorder %s149, %s151
    %p155 = scmp.eq.s32.totalorder %s17, 0
    %p156 = por %p154, %p155
    %p157 = scmp.ne.s32.totalorder %s149, %s151
    %p158 = scmp.eq.s32.totalorder %s22, 1
    %p159 = por %p157, %p158
    %p160 = scmp.ne.s32.totalorder %s151, %s152
    %p161 = scmp.eq.s32.totalorder %s22, 0
    %p162 = por %p160, %p161
    %p163 = scmp.ne.s32.totalorder %s151, %s152
    %p164 = scmp.eq.s32.totalorder %s23, 1
    %p165 = por %p163, %p164
    %p167 = scmp.ne.s32.totalorder %s152, %s166
    %p168 = scmp.eq.s32.totalorder %s23, 0
    %p169 = por %p167, %p168
    %s171 = sadd.s32 %s170, 1
    %p174 = scmp.eq.s32.totalorder %s17, 1
    %p175 = scmp.ne.s32.totalorder %s170, %s172
    %p176 = scmp.eq.s32.totalorder %s17, 0
    %p177 = por %p175, %p176
    %p178 = scmp.ne.s32.totalorder %s170, %s172
    %p179 = scmp.eq.s32.totalorder %s22, 1
    %p180 = por %p178, %p179
    %p181 = scmp.ne.s32.totalorder %s172, %s173
    %p182 = scmp.eq.s32.totalorder %s22, 0
    %p183 = por %p181, %p182
    %p184 = scmp.ne.s32.totalorder %s172, %s173
    %p185 = scmp.eq.s32.totalorder %s23, 1
    %p186 = por %p184, %p185
    %p188 = scmp.ne.s32.totalorder %s173, %s187
    %p189 = scmp.eq.s32.totalorder %s23, 0
    %p190 = por %p188, %p189
    %s192 = sadd.s32 %s191, 1
    %p195 = scmp.eq.s32.totalorder %s17, 1
    %p196 = scmp.ne.s32.totalorder %s191, %s193
    %p197 = scmp.eq.s32.totalorder %s17, 0
    %p198 = por %p196, %p197
    %p199 = scmp.ne.s32.totalorder %s191, %s193
    %p200 = scmp.eq.s32.totalorder %s22, 1
    %p201 = por %p199, %p200
    %p202 = scmp.ne.s32.totalorder %s193, %s194
    %p203 = scmp.eq.s32.totalorder %s22, 0
    %p204 = por %p202, %p203
    %p205 = scmp.ne.s32.totalorder %s193, %s194
    %p206 = scmp.eq.s32.totalorder %s23, 1
    %p207 = por %p205, %p206
    %p209 = scmp.ne.s32.totalorder %s194, %s208
    %p210 = scmp.eq.s32.totalorder %s23, 0
    %p211 = por %p209, %p210
    %s213 = sadd.s32 %s212, 1
    %p216 = scmp.eq.s32.totalorder %s17, 1
    %p217 = scmp.ne.s32.totalorder %s212, %s214
    %p218 = scmp.eq.s32.totalorder %s17, 0
    %p219 = por %p217, %p218
    %p220 = scmp.ne.s32.totalorder %s212, %s214
    %p221 = scmp.eq.s32.totalorder %s22, 1
    %p222 = por %p220, %p221
    %p223 = scmp.ne.s32.totalorder %s214, %s215
    %p224 = scmp.eq.s32.totalorder %s22, 0
    %p225 = por %p223, %p224
    %p226 = scmp.ne.s32.totalorder %s214, %s215
    %p227 = scmp.eq.s32.totalorder %s23, 1
    %p228 = por %p226, %p227
    %p230 = scmp.ne.s32.totalorder %s215, %s229
    %p231 = scmp.eq.s32.totalorder %s23, 0
    %p232 = por %p230, %p231
    %s234 = sadd.s32 %s233, 1
    %p237 = scmp.eq.s32.totalorder %s17, 1
    %p238 = scmp.ne.s32.totalorder %s233, %s235
    %p239 = scmp.eq.s32.totalorder %s17, 0
    %p240 = por %p238, %p239
    %p241 = scmp.ne.s32.totalorder %s233, %s235
    %p242 = scmp.eq.s32.totalorder %s22, 1
    %p243 = por %p241, %p242
    %p244 = scmp.ne.s32.totalorder %s235, %s236
    %p245 = scmp.eq.s32.totalorder %s22, 0
    %p246 = por %p244, %p245
    %p247 = scmp.ne.s32.totalorder %s235, %s236
    %p248 = scmp.eq.s32.totalorder %s23, 1
    %p249 = por %p247, %p248
    %p251 = scmp.ne.s32.totalorder %s236, %s250
    %p252 = scmp.eq.s32.totalorder %s23, 0
    %p253 = por %p251, %p252
    %s255 = sadd.s32 %s254, 1
    %p258 = scmp.eq.s32.totalorder %s17, 1
    %p259 = scmp.ne.s32.totalorder %s254, %s256
    %p260 = scmp.eq.s32.totalorder %s17, 0
    %p261 = por %p259, %p260
    %p262 = scmp.ne.s32.totalorder %s254, %s256
    %p263 = scmp.eq.s32.totalorder %s22, 1
    %p264 = por %p262, %p263
    %p265 = scmp.ne.s32.totalorder %s256, %s257
    %p266 = scmp.eq.s32.totalorder %s22, 0
    %p267 = por %p265, %p266
    %p268 = scmp.ne.s32.totalorder %s256, %s257
    %p269 = scmp.eq.s32.totalorder %s23, 1
    %p270 = por %p268, %p269
    %p272 = scmp.ne.s32.totalorder %s257, %s271
    %p273 = scmp.eq.s32.totalorder %s23, 0
    %p274 = por %p272, %p273
    %s275 = ssub.s32 %s24, %s36
    %s276 = ssub.s32 %s25, %s32
    %s277 = sor.u32 %s275, %s276
    %p278 = scmp.eq.s32.totalorder %s277, 0
    %s280 = sadd.s32 %s279, 1
    %s281 = scalar_select %p278, %s279, %s280
    %p284 = pneg %p278
    %p285 = scmp.eq.s32.totalorder %s17, 1
    %p286 = por %p284, %p285
    %p287 = scmp.ne.s32.totalorder %s279, %s282
    %p288 = scmp.eq.s32.totalorder %s17, 0
    %p289 = por %p287, %p288
    %p290 = scmp.ne.s32.totalorder %s279, %s282
    %p291 = scmp.eq.s32.totalorder %s22, 1
    %p292 = por %p290, %p291
    %p293 = scmp.ne.s32.totalorder %s282, %s283
    %p294 = scmp.eq.s32.totalorder %s22, 0
    %p295 = por %p293, %p294
    %p296 = scmp.ne.s32.totalorder %s282, %s283
    %p297 = scmp.eq.s32.totalorder %s23, 1
    %p298 = por %p296, %p297
    %p300 = scmp.ne.s32.totalorder %s283, %s299
    %p301 = scmp.eq.s32.totalorder %s23, 0
    %p302 = por %p300, %p301
    %p303 = scmp.le.s32.totalorder 1, %s17
    %p304 = scmp.lt.s32.totalorder %s17, 3
    %p305 = pnand %p303, %p304
    %p306 = pneg %p305
    // Predicated region
    $region9: #{tpu_custom_call.1} parent=5 // pred_check
      _
    $region10: #{tpu_custom_call.1} parent=5 // pred_check_branch
      %308 = sbr.rel (%p305) target = $region12
    $region11: #{tpu_custom_call.1} parent=5 // pred_region
      %s309 = ssub.s32 %s17, 1
      // Predicated region
      $region13: #{tpu_custom_call.1} parent=11 // pred_check
        %p310 = pneg %p78
      $region14: #{tpu_custom_call.1} parent=11 // pred_check_branch
        %312 = sbr.rel (%p310) target = $region16
      $region15: #{tpu_custom_call.1} parent=11 // pred_region
        _
      $region16: #{tpu_custom_call.1} parent=11 // pred_fallthru
        _
      // Predicated region
      $region17: #{tpu_custom_call.1} parent=11 // pred_check
        %p313 = pneg %p99
      $region18: #{tpu_custom_call.1} parent=11 // pred_check_branch
        %315 = sbr.rel (%p313) target = $region20
      $region19: #{tpu_custom_call.1} parent=11 // pred_region
        _
      $region20: #{tpu_custom_call.1} parent=11 // pred_fallthru
        _
      // Predicated region
      $region21: #{tpu_custom_call.1} parent=11 // pred_check
        %p316 = pneg %p120
      $region22: #{tpu_custom_call.1} parent=11 // pred_check_branch
        %318 = sbr.rel (%p316) target = $region24
      $region23: #{tpu_custom_call.1} parent=11 // pred_region
        _
      $region24: #{tpu_custom_call.1} parent=11 // pred_fallthru
        _
      // Predicated region
      $region25: #{tpu_custom_call.1} parent=11 // pred_check
        %p319 = pneg %p141
      $region26: #{tpu_custom_call.1} parent=11 // pred_check_branch
        %321 = sbr.rel (%p319) target = $region28
      $region27: #{tpu_custom_call.1} parent=11 // pred_region
        _
      $region28: #{tpu_custom_call.1} parent=11 // pred_fallthru
        _
      // Predicated region
      $region29: #{tpu_custom_call.1} parent=11 // pred_check
        %p322 = pneg %p162
      $region30: #{tpu_custom_call.1} parent=11 // pred_check_branch
        %324 = sbr.rel (%p322) target = $region32
      $region31: #{tpu_custom_call.1} parent=11 // pred_region
        _
      $region32: #{tpu_custom_call.1} parent=11 // pred_fallthru
        _
      // Predicated region
      $region33: #{tpu_custom_call.1} parent=11 // pred_check
        %p325 = pneg %p183
      $region34: #{tpu_custom_call.1} parent=11 // pred_check_branch
        %327 = sbr.rel (%p325) target = $region36
      $region35: #{tpu_custom_call.1} parent=11 // pred_region
        _
      $region36: #{tpu_custom_call.1} parent=11 // pred_fallthru
        _
      // Predicated region
      $region37: #{tpu_custom_call.1} parent=11 // pred_check
        %p328 = pneg %p204
      $region38: #{tpu_custom_call.1} parent=11 // pred_check_branch
        %330 = sbr.rel (%p328) target = $region40
      $region39: #{tpu_custom_call.1} parent=11 // pred_region
        _
      $region40: #{tpu_custom_call.1} parent=11 // pred_fallthru
        _
      // Predicated region
      $region41: #{tpu_custom_call.1} parent=11 // pred_check
        %p331 = pneg %p225
      $region42: #{tpu_custom_call.1} parent=11 // pred_check_branch
        %333 = sbr.rel (%p331) target = $region44
      $region43: #{tpu_custom_call.1} parent=11 // pred_region
        _
      $region44: #{tpu_custom_call.1} parent=11 // pred_fallthru
        _
      // Predicated region
      $region45: #{tpu_custom_call.1} parent=11 // pred_check
        %p334 = pneg %p246
      $region46: #{tpu_custom_call.1} parent=11 // pred_check_branch
        %336 = sbr.rel (%p334) target = $region48
      $region47: #{tpu_custom_call.1} parent=11 // pred_region
        _
      $region48: #{tpu_custom_call.1} parent=11 // pred_fallthru
        _
      // Predicated region
      $region49: #{tpu_custom_call.1} parent=11 // pred_check
        %p337 = pneg %p267
      $region50: #{tpu_custom_call.1} parent=11 // pred_check_branch
        %339 = sbr.rel (%p337) target = $region52
      $region51: #{tpu_custom_call.1} parent=11 // pred_region
        _
      $region52: #{tpu_custom_call.1} parent=11 // pred_fallthru
        _
    $region12: #{tpu_custom_call.1} parent=5 // pred_fallthru
      _
    %p340 = scmp.lt.s32.totalorder %s17, 2
    // Predicated region
    $region53: #{tpu_custom_call.1} parent=5 // pred_check
      %p341 = pneg %p340
    $region54: #{tpu_custom_call.1} parent=5 // pred_check_branch
      %343 = sbr.rel (%p341) target = $region56
    $region55: #{tpu_custom_call.1} parent=5 // pred_region
      // Predicated region
      $region57: #{tpu_custom_call.1} parent=55 // pred_check
        %p344 = pneg %p51
      $region58: #{tpu_custom_call.1} parent=55 // pred_check_branch
        %346 = sbr.rel (%p344) target = $region60
      $region59: #{tpu_custom_call.1} parent=55 // pred_region
        %p347 = scmp.lt.s32.totalorder %s24, 1
        %s348 = scalar_select %p347, %s24, 1
        %p349 = scmp.lt.s32.totalorder %s25, 0
        %s350 = scalar_select %p349, %s25, 0
        %s351 = smul.addr %s350, 4
        %s352 = smul.addr %s348, 4
        %s353 = sadd.s32 %s351, %s352
        %s354 = smul.addr %s353, 8
        %s355 = scalar_lea.vmem %s0, %s354
      $region60: #{tpu_custom_call.1} parent=55 // pred_fallthru
        _
    $region56: #{tpu_custom_call.1} parent=5 // pred_fallthru
      _
    %p356 = scmp.le.s32.totalorder 1, %s17
    %p357 = scmp.lt.s32.totalorder %s17, 3
    %p358 = pnand %p356, %p357
    %p359 = pneg %p358
    // Predicated region
    $region61: #{tpu_custom_call.1} parent=5 // pred_check
      _
    $region62: #{tpu_custom_call.1} parent=5 // pred_check_branch
      %361 = sbr.rel (%p358) target = $region64
    $region63: #{tpu_custom_call.1} parent=5 // pred_region
      %s362 = ssub.s32 %s17, 1
      %p363 = scmp.lt.s32.totalorder %s26, 1
      %s364 = scalar_select %p363, %s26, 1
      %p365 = scmp.lt.s32.totalorder %s27, 0
      %s366 = scalar_select %p365, %s27, 0
      %s367 = smul.addr %s366, 4
      %s368 = smul.addr %s364, 4
      %s369 = sadd.s32 %s367, %s368
      %s370 = smul.addr %s369, 8
      %s371 = scalar_lea.vmem %s0, %s370
      %p372 = pneg %p57
      %p373 = pneg %p54
      %p374 = pneg %p78
      %p375 = pneg %p75
      %p376 = pneg %p99
      %p377 = pneg %p96
      %p378 = pneg %p120
      %p379 = pneg %p117
      %p380 = pneg %p141
      %p381 = pneg %p138
      %p382 = pneg %p162
      %p383 = pneg %p159
      %p384 = pneg %p183
      %p385 = pneg %p180
      %p386 = pneg %p204
      %p387 = pneg %p201
      %p388 = pneg %p225
      %p389 = pneg %p222
      %p390 = pneg %p246
      %p391 = pneg %p243
      %p392 = pneg %p267
      %p393 = pneg %p264
      %p394 = pneg %p295
      %p395 = pneg %p292
      %p396 = scmp.lt.s32.totalorder %s26, 1
      %s397 = scalar_select %p396, %s26, 1
      %p398 = scmp.lt.s32.totalorder %s27, 0
      %s399 = scalar_select %p398, %s27, 0
      %s400 = smul.addr %s397, 24
      %s401 = sadd.s32 %s399, %s400
      %s402 = smul.addr %s401, 8
      %s403 = scalar_lea.vmem %s11, %s402
      %p404 = scmp.lt.s32.totalorder %s26, 1
      %s405 = scalar_select %p404, %s26, 1
      %p406 = scmp.lt.s32.totalorder %s27, 0
      %s407 = scalar_select %p406, %s27, 0
      %s408 = smul.addr %s407, 4
      %s409 = smul.addr %s405, 4
      %s410 = sadd.s32 %s408, %s409
      %s411 = smul.addr %s410, 8
      %s412 = scalar_lea.vmem %s0, %s411
      %p413 = scmp.lt.s32.totalorder %s26, 1
      %s414 = scalar_select %p413, %s26, 1
      %p415 = scmp.lt.s32.totalorder %s27, 0
      %s416 = scalar_select %p415, %s27, 0
      %s417 = smul.addr %s414, 24
      %s418 = sadd.s32 %s416, %s417
      %s419 = smul.addr %s418, 8
      %s420 = scalar_lea.vmem %s11, %s419
      %s422 = smul.u32 %s27, 16
      %s423 = smul.u32 %s27, 8
      %p424 = scmp.eq.s32.totalorder %s27, 0
      %v425 = vld [vmem:[%s412] sm:$0xff]
      %v426 = vld [vmem:[%s412 + $0x8] sm:$0xff]
      %v427 = vld [vmem:[%s412 + $0x10] sm:$0xff]
      %v428 = vld [vmem:[%s412 + $0x18] sm:$0x1]
      %v429 = vld [vmem:[%s412 + $0x1] sm:$0xff]
      %v430 = vld [vmem:[%s412 + $0x9] sm:$0xff]
      %v431 = vld [vmem:[%s412 + $0x11] sm:$0xff]
      %v432 = vld [vmem:[%s412 + $0x19] sm:$0x1]
      %v433 = vld [vmem:[%s412 + $0x2] sm:$0xff]
      %v434 = vld [vmem:[%s412 + $0xa] sm:$0xff]
      %v435 = vld [vmem:[%s412 + $0x12] sm:$0xff]
      %v436 = vld [vmem:[%s412 + $0x1a] sm:$0x1]
      %441 = vrot.lane.b32.xlu0 %v429, 2
      %v442 = vpop.permute.xlu0 %441
      %443 = vrot.lane.b32.xlu0 %v430, 2
      %v444 = vpop.permute.xlu0 %443
      %445 = vrot.lane.b32.xlu0 %v431, 2
      %v446 = vpop.permute.xlu0 %445
      %447 = vrot.lane.b32.xlu0 %v432, 2
      %v448 = vpop.permute.xlu0 %447
      %457 = vrot.lane.b32.xlu0 %v433, 4
      %v458 = vpop.permute.xlu0 %457
      %459 = vrot.lane.b32.xlu0 %v434, 4
      %v460 = vpop.permute.xlu0 %459
      %461 = vrot.lane.b32.xlu0 %v435, 4
      %v462 = vpop.permute.xlu0 %461
      %463 = vrot.lane.b32.xlu0 %v436, 4
      %v464 = vpop.permute.xlu0 %463
      %vm469 = vcmask 15360
      %v470 = vsel %vm469, %v425, %v442
      %v471 = vsel %vm469, %v426, %v444
      %v472 = vsel %vm469, %v427, %v446
      %v473 = vsel %vm469, %v428, %v448
      %vm474 = vcmask 31744
      %v475 = vsel %vm474, %v470, %v458
      %v476 = vsel %vm474, %v471, %v460
      %v477 = vsel %vm474, %v472, %v462
      %v478 = vsel %vm474, %v473, %v464
      %v479 = vpack.c.bf16 %v476, %v475
      %v480 = vpack.c.bf16 %v478, %v477
      %v481 = vld [vmem:[%s1] sm:$0x7]
      %v482 = vld [vmem:[%s2] sm:$0x1]
      %v484 = vlaneseq
      %v485 = vshrl.u32 %v484, 7
      %v486 = vsub.s32 0, %v485
      %v487 = vrot.slane %v482, %v486
      %vm489 = vcmask 48128
      %v491 = vsel %vm489, %v479, 0
      %v494 = vsel %vm489, %v480, 0
      %vm496 = vcmask 1042432
      %v498 = vsel %vm496, %v481, 0
      %500 = vmatprep.subr.bf16.mxu0 0
      %501 = vmatpush1.bf16.msra.mxu0 %v498
      %502 = vmatprep.subr.bf16.mxu0 0
      %503 = vmatpush1.bf16.msra.mxu0 0
      %504 = vmatprep.subr.bf16.mxu0 0
      %505 = vmatpush1.bf16.msra.mxu0 0
      %506 = vmatprep.subr.bf16.mxu0 0
      %507 = vmatpush1.bf16.msra.mxu0 0
      %508 = vmatprep.subr.bf16.mxu0 0
      %509 = vmatpush1.bf16.msra.mxu0 0
      %510 = vmatprep.subr.bf16.mxu0 0
      %511 = vmatpush1.bf16.msra.mxu0 0
      %512 = vmatprep.subr.bf16.mxu0 0
      %513 = vmatpush1.bf16.msra.mxu0 0
      %514 = vmatprep.subr.bf16.mxu0 0
      %515 = vmatpush1.bf16.msra.mxu0 0
      %516 = vmatprep.subr.bf16.mxu0 0
      %517 = vmatpush1.bf16.msra.mxu0 0
      %518 = vmatprep.subr.bf16.mxu0 0
      %519 = vmatpush1.bf16.msra.mxu0 0
      %520 = vmatprep.subr.bf16.mxu0 0
      %521 = vmatpush1.bf16.msra.mxu0 0
      %522 = vmatprep.subr.bf16.mxu0 0
      %523 = vmatpush1.bf16.msra.mxu0 0
      %524 = vmatprep.subr.bf16.mxu0 0
      %525 = vmatpush1.bf16.msra.mxu0 0
      %526 = vmatprep.subr.bf16.mxu0 0
      %527 = vmatpush1.bf16.msra.mxu0 0
      %528 = vmatprep.subr.bf16.mxu0 0
      %529 = vmatpush1.bf16.msra.mxu0 0
      %530 = vmatprep.subr.bf16.mxu0 0
      %531 = vmatpush1.bf16.msra.mxu0 0
      %532 = vmatprep.mubr.bf16.mxu0 0
      %533 = vmatmul.mubr.bf16.gmra.mrb[0].mxu0 %v491
      %v534 = vpop.f32.mrb[0].mxu0
      %v535 = vadd.f32 %v487, %v534
      %v536 = vpop.f32.mrb[0].mxu0
      %v537 = vpop.f32.mrb[0].mxu0
      %v538 = vadd.f32 %v487, %v537
      %v539 = vpop.f32.mrb[0].mxu0
      %540 = vmatprep.mubr.bf16.mxu0 0
      %541 = vmatmul.mubr.bf16.gmra.mrb[0].mxu0 %v494
      %v542 = vpop.f32.mrb[0].mxu0
      %v543 = vadd.f32 %v487, %v542
      %v544 = vpop.f32.mrb[0].mxu0
      %v545 = vpop.f32.mrb[0].mxu0
      %v546 = vadd.f32 %v487, %v545
      %v547 = vpop.f32.mrb[0].mxu0
      %548 = vdwg.mxu0
      %v549 = vxor.u32 %v535, 2147483648
      %v550 = vxor.u32 %v538, 2147483648
      %v551 = vxor.u32 %v543, 2147483648
      %v552 = vxor.u32 %v546, 2147483648
      %v553 = vmul.f32 %v549, 1.442695
      %v554 = vpow.pop %v553
      %v555 = vmul.f32 %v550, 1.442695
      %v556 = vpow.pop %v555
      %v557 = vmul.f32 %v551, 1.442695
      %v558 = vpow.pop %v557
      %v559 = vmul.f32 %v552, 1.442695
      %v560 = vpow.pop %v559
      %v561 = vadd.f32 %v554, 1.0
      %v562 = vadd.f32 %v556, 1.0
      %v563 = vadd.f32 %v558, 1.0
      %v564 = vadd.f32 %v560, 1.0
      %v565 = vrcp.pop %v561
      %v566 = vmul.f32 1.0, %v565
      %v567 = vrcp.pop %v562
      %v568 = vmul.f32 1.0, %v567
      %v569 = vrcp.pop %v563
      %v570 = vmul.f32 1.0, %v569
      %v571 = vrcp.pop %v564
      %v572 = vmul.f32 1.0, %v571
      %v573 = vmul.f32 %v535, %v566
      %v574 = vmul.f32 %v538, %v568
      %v575 = vmul.f32 %v543, %v570
      %v576 = vmul.f32 %v546, %v572
      %s577 = ssub.s32 %s422, 6
      // Predicated region
      $region65: #{tpu_custom_call.1} parent=63 // pred_check
        %p578 = pneg %p424
      $region66: #{tpu_custom_call.1} parent=63 // pred_check_branch
        %580 = sbr.rel (%p578) target = $region68
      $region67: #{tpu_custom_call.1} parent=63 // pred_region
        %v581 = vlaneseq
        %v582 = vshrl.u32 %v581, 7
        %v583 = vadd.s32 %v582, 8
        %v584 = vadd.s32 %v582, 16
        %v585 = vadd.s32 %v582, 24
        %v586 = vstv %s577
        %v587 = vadd.s32 %v586, %v582
        %v588 = vadd.s32 %v586, %v583
        %v589 = vadd.s32 %v586, %v584
        %v590 = vadd.s32 %v586, %v585
        %vm591 = vcmp.ge.s32.totalorder %v587, 0
        %vm592 = vcmp.ge.s32.totalorder %v588, 0
        %vm593 = vcmp.ge.s32.totalorder %v589, 0
        %vm594 = vcmp.ge.s32.totalorder %v590, 0
        %vm595 = vcmp.lt.s32.totalorder %v587, 16
        %vm596 = vcmp.lt.s32.totalorder %v588, 16
        %vm597 = vcmp.lt.s32.totalorder %v589, 16
        %vm598 = vcmp.lt.s32.totalorder %v590, 16
        %vm599 = vmand %vm591, %vm595
        %vm600 = vmand %vm592, %vm596
        %vm601 = vmand %vm593, %vm597
        %vm602 = vmand %vm594, %vm598
        %v603 = vsel %vm599, 1, 0
        %v604 = vsel %vm600, 1, 0
        %v605 = vsel %vm601, 1, 0
        %v606 = vsel %vm602, 1, 0
        %vm607 = vcmp.eq.s32.totalorder %v603, 1
        %vm608 = vcmp.eq.s32.totalorder %v604, 1
        %vm609 = vcmp.eq.s32.totalorder %v605, 1
        %vm610 = vcmp.eq.s32.totalorder %v606, 1
        %v611 = vsel %vm607, %v573, 0.0
        %v612 = vsel %vm608, %v574, 0.0
        %v613 = vsel %vm609, %v575, 0.0
        %v614 = vsel %vm610, %v576, 0.0
        %v615 = vpack.c.bf16 %v612, %v611
        %v616 = vpack.c.bf16 %v614, %v613
        %v619 = vunpack.c.l.b16 %v615
        %v620 = vunpack.c.h.b16 %v615
        %v621 = vunpack.c.l.b16 %v616
        %v622 = vunpack.c.h.b16 %v616
        %v623 = vpack.c.b16 %v619, %v619
        %v624 = vpack.c.b16 %v620, %v620
        %v625 = vpack.c.b16 %v621, %v621
        %v626 = vpack.c.b16 %v622, %v622
        %vm631 = vcmask 125952
        %632 = vst.msk [vmem:[#allocation2] sm:$0xf] %vm631, %v623
        %633 = vst.msk [vmem:[#allocation2 + $0x4] sm:$0xf] %vm631, %v624
        %634 = vst.msk [vmem:[#allocation2 + $0x8] sm:$0xf] %vm631, %v625
        %vm635 = vcmask 122880
        %vm636 = vsmask.f32 256
        %vm637 = vmand %vm635, %vm636
        %v638 = vld [vmem:[#allocation2 + $0xc] sm:$0x1]
        %v639 = vsel %vm637, %v626, %v638
        %640 = vst [vmem:[#allocation2 + $0xc] sm:$0x1] %v639
      $region68: #{tpu_custom_call.1} parent=63 // pred_fallthru
        _
      %p641 = scmp.ne.s32.totalorder %s27, 0
      // Predicated region
      $region69: #{tpu_custom_call.1} parent=63 // pred_check
        %p642 = pneg %p641
      $region70: #{tpu_custom_call.1} parent=63 // pred_check_branch
        %644 = sbr.rel (%p642) target = $region72
      $region71: #{tpu_custom_call.1} parent=63 // pred_region
        %v645 = vpack.c.bf16 %v574, %v573
        %v646 = vpack.c.bf16 %v576, %v575
        %v649 = vunpack.c.l.b16 %v645
        %v650 = vunpack.c.h.b16 %v645
        %v651 = vunpack.c.l.b16 %v646
        %v652 = vunpack.c.h.b16 %v646
        %v653 = vpack.c.b16 %v649, %v649
        %v654 = vpack.c.b16 %v650, %v650
        %v655 = vpack.c.b16 %v651, %v651
        %v656 = vpack.c.b16 %v652, %v652
        %vm661 = vcmask 125952
        %662 = vst.msk [vmem:[#allocation2] sm:$0xf] %vm661, %v653
        %663 = vst.msk [vmem:[#allocation2 + $0x4] sm:$0xf] %vm661, %v654
        %664 = vst.msk [vmem:[#allocation2 + $0x8] sm:$0xf] %vm661, %v655
        %vm665 = vcmask 122880
        %vm666 = vsmask.f32 256
        %vm667 = vmand %vm665, %vm666
        %v668 = vld [vmem:[#allocation2 + $0xc] sm:$0x1]
        %v669 = vsel %vm667, %v656, %v668
        %670 = vst [vmem:[#allocation2 + $0xc] sm:$0x1] %v669
      $region72: #{tpu_custom_call.1} parent=63 // pred_fallthru
        _
      %v671 = vld [vmem:[#allocation2] sm:$0xf]
      %v672 = vld [vmem:[#allocation2 + $0x4] sm:$0xf]
      %v673 = vld [vmem:[#allocation2 + $0x8] sm:$0xf]
      %v674 = vld [vmem:[#allocation2] sm:$0xe]
      %v675 = vld [vmem:[#allocation2 + $0xc] sm:$0x1]
      %v679 = vunpack.c.l.b16 %v671
      %v680 = vunpack.c.l.b16 %v672
      %v681 = vunpack.c.l.b16 %v673
      %v682 = vpack.c.b16 %v680, %v679
      %v683 = vpack.c.b16 %v681, %v681
      %vm684 = vsmask.f32 7424
      %v686 = vshrl.u32 %v682, 16
      %v688 = vshll.u32 %v682, 16
      %v690 = vrot.slane %v688, 1
      %v691 = vor.u32 %v686, %v690
      %v693 = vshll.u32 %v683, 16
      %v695 = vrot.slane %v693, 1
      %v696 = vsel %vm684, %v691, %v695
      %v697 = vshrl.u32 %v683, 16
      %v699 = vor.u32 %v697, %v695
      %700 = vrot.lane.b32.xlu0 %v696, 16
      %v701 = vpop.permute.xlu0 %700
      %702 = vrot.lane.b32.xlu0 %v699, 16
      %v703 = vpop.permute.xlu0 %702
      %v706 = vunpack.c.l.b16 %v674
      %v707 = vunpack.c.l.b16 %v675
      %v708 = vpack.c.b16 %v680, %v706
      %v709 = vpack.c.b16 %v707, %v681
      %vm710 = vcmask 1046528
      %v711 = vrot.slane %v708, 1
      %v712 = vrot.slane %v709, 1
      %v713 = vsel %vm710, %v711, %v712
      %714 = vrot.lane.b32.xlu0 %v713, 32
      %v715 = vpop.permute.xlu0 %714
      %716 = vrot.lane.b32.xlu0 %v712, 32
      %v717 = vpop.permute.xlu0 %716
      %vm718 = vcmask 130048
      %v720 = vsel %vm718, %v682, %v701
      %v722 = vsel %vm718, %v683, %v703
      %vm723 = vcmask 261120
      %v725 = vsel %vm723, %v720, %v715
      %v727 = vsel %vm723, %v722, %v717
      %v728 = vld [vmem:[%s3] sm:$0xf]
      %v729 = vld [vmem:[%s3 + $0x4] sm:$0xf]
      %v730 = vld [vmem:[%s3 + $0x8] sm:$0xf]
      %v731 = vld [vmem:[%s3 + $0xc] sm:$0xf]
      %v732 = vld [vmem:[%s3 + $0x10] sm:$0xf]
      %v733 = vld [vmem:[%s3 + $0x14] sm:$0xf]
      %v734 = vld [vmem:[%s4] sm:$0x1]
      %v736 = vlaneseq
      %v737 = vshrl.u32 %v736, 7
      %v738 = vsub.s32 0, %v737
      %v739 = vrot.slane %v734, %v738
      %v747 = vunpack.c.l.b16 %v728
      %v748 = vunpack.c.l.b16 %v729
      %v749 = vunpack.c.l.b16 %v730
      %v750 = vunpack.c.l.b16 %v731
      %v751 = vunpack.c.l.b16 %v732
      %v752 = vunpack.c.l.b16 %v733
      %v753 = vpack.c.b16 %v748, %v747
      %v754 = vpack.c.b16 %v750, %v749
      %v755 = vpack.c.b16 %v752, %v751
      %vm759 = vcmask 392192
      %v760 = vsel %vm759, %v725, 0
      %v762 = vsel %vm759, %v727, 0
      %764 = vmatprep.subr.bf16.mxu0 0
      %765 = vmatpush1.bf16.msra.mxu0 %v753
      %766 = vmatprep.subr.bf16.mxu0 0
      %767 = vmatpush1.bf16.msra.mxu0 %v754
      %768 = vmatprep.subr.bf16.mxu0 0
      %769 = vmatpush1.bf16.msra.mxu0 %v755
      %770 = vmatprep.subr.bf16.mxu0 0
      %771 = vmatpush1.bf16.msra.mxu0 0
      %772 = vmatprep.subr.bf16.mxu0 0
      %773 = vmatpush1.bf16.msra.mxu0 0
      %774 = vmatprep.subr.bf16.mxu0 0
      %775 = vmatpush1.bf16.msra.mxu0 0
      %776 = vmatprep.subr.bf16.mxu0 0
      %777 = vmatpush1.bf16.msra.mxu0 0
      %778 = vmatprep.subr.bf16.mxu0 0
      %779 = vmatpush1.bf16.msra.mxu0 0
      %780 = vmatprep.subr.bf16.mxu0 0
      %781 = vmatpush1.bf16.msra.mxu0 0
      %782 = vmatprep.subr.bf16.mxu0 0
      %783 = vmatpush1.bf16.msra.mxu0 0
      %784 = vmatprep.subr.bf16.mxu0 0
      %785 = vmatpush1.bf16.msra.mxu0 0
      %786 = vmatprep.subr.bf16.mxu0 0
      %787 = vmatpush1.bf16.msra.mxu0 0
      %788 = vmatprep.subr.bf16.mxu0 0
      %789 = vmatpush1.bf16.msra.mxu0 0
      %790 = vmatprep.subr.bf16.mxu0 0
      %791 = vmatpush1.bf16.msra.mxu0 0
      %792 = vmatprep.subr.bf16.mxu0 0
      %793 = vmatpush1.bf16.msra.mxu0 0
      %794 = vmatprep.subr.bf16.mxu0 0
      %795 = vmatpush1.bf16.msra.mxu0 0
      %796 = vmatprep.mubr.bf16.mxu0 0
      %797 = vmatmul.mubr.bf16.gmra.mrb[0].mxu0 %v760
      %v798 = vpop.f32.mrb[0].mxu0
      %v799 = vadd.f32 %v739, %v798
      %v800 = vpop.f32.mrb[0].mxu0
      %v801 = vpop.f32.mrb[0].mxu0
      %v802 = vadd.f32 %v739, %v801
      %v803 = vpop.f32.mrb[0].mxu0
      %804 = vmatprep.mubr.bf16.mxu0 0
      %805 = vmatmul.mubr.bf16.gmra.mrb[0].mxu0 %v762
      %v806 = vpop.f32.mrb[0].mxu0
      %v807 = vadd.f32 %v739, %v806
      %v808 = vpop.f32.mrb[0].mxu0
      %v809 = vpop.f32.mrb[0].mxu0
      %v810 = vpop.f32.mrb[0].mxu0
      %811 = vdwg.mxu0
      %v812 = vxor.u32 %v799, 2147483648
      %v813 = vxor.u32 %v802, 2147483648
      %v814 = vxor.u32 %v807, 2147483648
      %v815 = vmul.f32 %v812, 1.442695
      %v816 = vpow.pop %v815
      %v817 = vmul.f32 %v813, 1.442695
      %v818 = vpow.pop %v817
      %v819 = vmul.f32 %v814, 1.442695
      %v820 = vpow.pop %v819
      %v821 = vadd.f32 %v816, 1.0
      %v822 = vadd.f32 %v818, 1.0
      %v823 = vadd.f32 %v820, 1.0
      %v824 = vrcp.pop %v821
      %v825 = vmul.f32 1.0, %v824
      %v826 = vrcp.pop %v822
      %v827 = vmul.f32 1.0, %v826
      %v828 = vrcp.pop %v823
      %v829 = vmul.f32 1.0, %v828
      %v830 = vmul.f32 %v799, %v825
      %v831 = vmul.f32 %v802, %v827
      %v832 = vmul.f32 %v807, %v829
      %s833 = ssub.s32 %s422, 5
      // Predicated region
      $region73: #{tpu_custom_call.1} parent=63 // pred_check
        %p834 = pneg %p424
      $region74: #{tpu_custom_call.1} parent=63 // pred_check_branch
        %836 = sbr.rel (%p834) target = $region76
      $region75: #{tpu_custom_call.1} parent=63 // pred_region
        %v837 = vlaneseq
        %v838 = vshrl.u32 %v837, 7
        %v839 = vadd.s32 %v838, 8
        %v840 = vadd.s32 %v838, 16
        %v841 = vstv %s833
        %v842 = vadd.s32 %v841, %v838
        %v843 = vadd.s32 %v841, %v839
        %v844 = vadd.s32 %v841, %v840
        %vm845 = vcmp.ge.s32.totalorder %v842, 0
        %vm846 = vcmp.ge.s32.totalorder %v843, 0
        %vm847 = vcmp.ge.s32.totalorder %v844, 0
        %vm848 = vcmp.lt.s32.totalorder %v842, 16
        %vm849 = vcmp.lt.s32.totalorder %v843, 16
        %vm850 = vcmp.lt.s32.totalorder %v844, 16
        %vm851 = vmand %vm845, %vm848
        %vm852 = vmand %vm846, %vm849
        %vm853 = vmand %vm847, %vm850
        %v854 = vsel %vm851, 1, 0
        %v855 = vsel %vm852, 1, 0
        %v856 = vsel %vm853, 1, 0
        %vm857 = vcmp.eq.s32.totalorder %v854, 1
        %vm858 = vcmp.eq.s32.totalorder %v855, 1
        %vm859 = vcmp.eq.s32.totalorder %v856, 1
        %v860 = vsel %vm857, %v830, 0.0
        %v861 = vsel %vm858, %v831, 0.0
        %v862 = vsel %vm859, %v832, 0.0
        %vm863 = vcmask 523264
        %864 = vst.msk [vmem:[#allocation3] sm:$0xff] %vm863, %v860
        %865 = vst.msk [vmem:[#allocation3 + $0x8] sm:$0xff] %vm863, %v861
        %vm866 = vcmask 522240
        %867 = vst.msk [vmem:[#allocation3 + $0x10] sm:$0x7f] %vm866, %v862
      $region76: #{tpu_custom_call.1} parent=63 // pred_fallthru
        _
      %p868 = pneg %p424
      // Predicated region
      $region77: #{tpu_custom_call.1} parent=63 // pred_check
        _
      $region78: #{tpu_custom_call.1} parent=63 // pred_check_branch
        %870 = sbr.rel (%p424) target = $region80
      $region79: #{tpu_custom_call.1} parent=63 // pred_region
        %vm871 = vcmask 523264
        %872 = vst.msk [vmem:[#allocation3] sm:$0xff] %vm871, %v830
        %873 = vst.msk [vmem:[#allocation3 + $0x8] sm:$0xff] %vm871, %v831
        %vm874 = vcmask 522240
        %875 = vst.msk [vmem:[#allocation3 + $0x10] sm:$0x7f] %vm874, %v832
      $region80: #{tpu_custom_call.1} parent=63 // pred_fallthru
        _
      %v876 = vld [vmem:[#allocation3] ss:$2 sm:$0xff]
      %s877 = scalar_lea.vmem [#allocation3], 16
      %v878 = vld [vmem:[%s877] ss:$2 sm:$0x7]
      %s879 = scalar_lea.vmem [#allocation3], 1
      %v880 = vld [vmem:[%s879] ss:$2 sm:$0xff]
      %s881 = scalar_lea.vmem [#allocation3], 17
      %v882 = vld [vmem:[%s881] ss:$2 sm:$0x7]
      %s883 = scalar_lea.vmem [#allocation3], 2
      %v884 = vld [vmem:[%s883] ss:$2 sm:$0xff]
      %s885 = scalar_lea.vmem [#allocation3], 18
      %v886 = vld [vmem:[%s885] ss:$2 sm:$0x7]
      %889 = vrot.lane.b32.xlu0 %v880, 64
      %v890 = vpop.permute.xlu0 %889
      %891 = vrot.lane.b32.xlu0 %v882, 64
      %v892 = vpop.permute.xlu0 %891
      %vm895 = vcmask 523264
      %v896 = vsel %vm895, %v876, %v890
      %v897 = vsel %vm895, %v878, %v892
      %v898 = vpack.c.bf16 %v897, %v896
      %v899 = vpack.c.bf16 %v886, %v884
      %v900 = vld [vmem:[%s5] sm:$0xf]
      %v901 = vld [vmem:[%s5 + $0x4] sm:$0xf]
      %v902 = vld [vmem:[%s5 + $0x8] sm:$0xf]
      %v903 = vld [vmem:[%s5 + $0xc] sm:$0xf]
      %v904 = vld [vmem:[%s5 + $0x10] sm:$0xf]
      %v905 = vld [vmem:[%s5 + $0x14] sm:$0xf]
      %v906 = vld [vmem:[%s5 + $0x18] sm:$0xf]
      %v907 = vld [vmem:[%s5 + $0x1c] sm:$0xf]
      %v908 = vld [vmem:[%s5 + $0x20] sm:$0xf]
      %v909 = vld [vmem:[%s5 + $0x24] sm:$0xf]
      %v910 = vld [vmem:[%s5 + $0x28] sm:$0xf]
      %v911 = vld [vmem:[%s5 + $0x2c] sm:$0xf]
      %v912 = vld [vmem:[%s5 + $0x30] sm:$0xf]
      %v913 = vld [vmem:[%s5 + $0x34] sm:$0xf]
      %v914 = vld [vmem:[%s5 + $0x38] sm:$0xf]
      %v915 = vld [vmem:[%s5 + $0x3c] sm:$0xf]
      %v916 = vld [vmem:[%s5 + $0x40] sm:$0xf]
      %v917 = vld [vmem:[%s5 + $0x44] sm:$0xf]
      %v918 = vld [vmem:[%s5 + $0x48] sm:$0xf]
      %v919 = vld [vmem:[%s5 + $0x4c] sm:$0xf]
      %v920 = vld [vmem:[%s5 + $0x50] sm:$0xf]
      %v921 = vld [vmem:[%s5 + $0x54] sm:$0xf]
      %v922 = vld [vmem:[%s5 + $0x58] sm:$0xf]
      %v923 = vld [vmem:[%s5 + $0x5c] sm:$0xf]
      %v924 = vld [vmem:[%s6] sm:$0x1]
      %v926 = vlaneseq
      %v927 = vshrl.u32 %v926, 7
      %v928 = vsub.s32 0, %v927
      %v929 = vrot.slane %v924, %v928
      %v955 = vunpack.c.l.b16 %v900
      %v956 = vunpack.c.l.b16 %v901
      %v957 = vunpack.c.l.b16 %v902
      %v958 = vunpack.c.l.b16 %v903
      %v959 = vunpack.c.l.b16 %v904
      %v960 = vunpack.c.l.b16 %v905
      %v961 = vunpack.c.l.b16 %v906
      %v962 = vunpack.c.l.b16 %v907
      %v963 = vunpack.c.l.b16 %v908
      %v964 = vunpack.c.l.b16 %v909
      %v965 = vunpack.c.l.b16 %v910
      %v966 = vunpack.c.l.b16 %v911
      %v967 = vunpack.c.l.b16 %v912
      %v968 = vunpack.c.l.b16 %v913
      %v969 = vunpack.c.l.b16 %v914
      %v970 = vunpack.c.l.b16 %v915
      %v971 = vunpack.c.l.b16 %v916
      %v972 = vunpack.c.l.b16 %v917
      %v973 = vunpack.c.l.b16 %v918
      %v974 = vunpack.c.l.b16 %v919
      %v975 = vunpack.c.l.b16 %v920
      %v976 = vunpack.c.l.b16 %v921
      %v977 = vunpack.c.l.b16 %v922
      %v978 = vunpack.c.l.b16 %v923
      %v979 = vpack.c.b16 %v956, %v955
      %v980 = vpack.c.b16 %v958, %v957
      %v981 = vpack.c.b16 %v960, %v959
      %v982 = vpack.c.b16 %v962, %v961
      %v983 = vpack.c.b16 %v964, %v963
      %v984 = vpack.c.b16 %v966, %v965
      %v985 = vpack.c.b16 %v968, %v967
      %v986 = vpack.c.b16 %v970, %v969
      %v987 = vpack.c.b16 %v972, %v971
      %v988 = vpack.c.b16 %v974, %v973
      %v989 = vpack.c.b16 %v976, %v975
      %v990 = vpack.c.b16 %v978, %v977
      %v1004 = vsel %vm895, %v899, 0
      %1006 = vmatprep.subr.bf16.mxu0 0
      %1007 = vmatpush1.bf16.msra.mxu0 %v979
      %1008 = vmatprep.subr.bf16.mxu0 0
      %1009 = vmatpush1.bf16.msra.mxu0 %v980
      %1010 = vmatprep.subr.bf16.mxu0 0
      %1011 = vmatpush1.bf16.msra.mxu0 %v981
      %1012 = vmatprep.subr.bf16.mxu0 0
      %1013 = vmatpush1.bf16.msra.mxu0 %v982
      %1014 = vmatprep.subr.bf16.mxu0 0
      %1015 = vmatpush1.bf16.msra.mxu0 %v983
      %1016 = vmatprep.subr.bf16.mxu0 0
      %1017 = vmatpush1.bf16.msra.mxu0 %v984
      %1018 = vmatprep.subr.bf16.mxu0 0
      %1019 = vmatpush1.bf16.msra.mxu0 %v985
      %1020 = vmatprep.subr.bf16.mxu0 0
      %1021 = vmatpush1.bf16.msra.mxu0 %v986
      %1022 = vmatprep.subr.bf16.mxu0 0
      %1023 = vmatpush1.bf16.msra.mxu0 %v987
      %1024 = vmatprep.subr.bf16.mxu0 0
      %1025 = vmatpush1.bf16.msra.mxu0 %v988
      %1026 = vmatprep.subr.bf16.mxu0 0
      %1027 = vmatpush1.bf16.msra.mxu0 %v989
      %1028 = vmatprep.subr.bf16.mxu0 0
      %1029 = vmatpush1.bf16.msra.mxu0 %v990
      %1030 = vmatprep.subr.bf16.mxu0 0
      %1031 = vmatpush1.bf16.msra.mxu0 0
      %1032 = vmatprep.subr.bf16.mxu0 0
      %1033 = vmatpush1.bf16.msra.mxu0 0
      %1034 = vmatprep.subr.bf16.mxu0 0
      %1035 = vmatpush1.bf16.msra.mxu0 0
      %1036 = vmatprep.subr.bf16.mxu0 0
      %1037 = vmatpush1.bf16.msra.mxu0 0
      %1038 = vmatprep.mubr.bf16.mxu0 %v1004
      %1039 = vmatmul.mubr.bf16.gmra.mrb[0].mxu0 %v898
      %v1040 = vpop.f32.mrb[0].mxu0
      %v1041 = vadd.f32 %v929, %v1040
      %v1042 = vpop.f32.mrb[0].mxu0
      %v1043 = vpop.f32.mrb[0].mxu0
      %v1044 = vadd.f32 %v929, %v1043
      %v1045 = vpop.f32.mrb[0].mxu0
      %1046 = vdwg.mxu0
      %v1047 = vxor.u32 %v1041, 2147483648
      %v1048 = vxor.u32 %v1044, 2147483648
      %v1049 = vmul.f32 %v1047, 1.442695
      %v1050 = vpow.pop %v1049
      %v1051 = vmul.f32 %v1048, 1.442695
      %v1052 = vpow.pop %v1051
      %v1053 = vadd.f32 %v1050, 1.0
      %v1054 = vadd.f32 %v1052, 1.0
      %v1055 = vrcp.pop %v1053
      %v1056 = vmul.f32 1.0, %v1055
      %v1057 = vrcp.pop %v1054
      %v1058 = vmul.f32 1.0, %v1057
      %v1059 = vmul.f32 %v1041, %v1056
      %v1060 = vmul.f32 %v1044, %v1058
      %s1061 = ssub.s32 %s423, 2
      // Predicated region
      $region81: #{tpu_custom_call.1} parent=63 // pred_check
        %p1062 = pneg %p424
      $region82: #{tpu_custom_call.1} parent=63 // pred_check_branch
        %1064 = sbr.rel (%p1062) target = $region84
      $region83: #{tpu_custom_call.1} parent=63 // pred_region
        %v1065 = vlaneseq
        %v1066 = vshrl.u32 %v1065, 7
        %v1067 = vadd.s32 %v1066, 8
        %v1068 = vstv %s1061
        %v1069 = vadd.s32 %v1068, %v1066
        %v1070 = vadd.s32 %v1068, %v1067
        %vm1071 = vcmp.ge.s32.totalorder %v1069, 0
        %vm1072 = vcmp.ge.s32.totalorder %v1070, 0
        %vm1073 = vcmp.lt.s32.totalorder %v1069, 8
        %vm1074 = vcmp.lt.s32.totalorder %v1070, 8
        %vm1075 = vmand %vm1071, %vm1073
        %vm1076 = vmand %vm1072, %vm1074
        %v1077 = vsel %vm1075, 1, 0
        %v1078 = vsel %vm1076, 1, 0
        %vm1079 = vcmp.eq.s32.totalorder %v1077, 1
        %vm1080 = vcmp.eq.s32.totalorder %v1078, 1
        %v1081 = vsel %vm1079, %v1059, 0.0
        %v1082 = vsel %vm1080, %v1060, 0.0
        %v1083 = vpack.c.bf16 %v1082, %v1081
        %v1085 = vunpack.c.l.b16 %v1083
        %v1086 = vunpack.c.h.b16 %v1083
        %v1087 = vpack.c.b16 %v1085, %v1085
        %v1088 = vpack.c.b16 %v1086, %v1086
        %1091 = vst [vmem:[#allocation4] sm:$0xf] %v1087
        %vm1092 = vcmask 1041408
        %vm1093 = vsmask.f32 1280
        %vm1094 = vmand %vm1092, %vm1093
        %v1095 = vld [vmem:[#allocation4 + $0x4] sm:$0x3]
        %v1096 = vsel %vm1094, %v1088, %v1095
        %1097 = vst [vmem:[#allocation4 + $0x4] sm:$0x3] %v1096
      $region84: #{tpu_custom_call.1} parent=63 // pred_fallthru
        _
      %p1098 = pneg %p424
      // Predicated region
      $region85: #{tpu_custom_call.1} parent=63 // pred_check
        _
      $region86: #{tpu_custom_call.1} parent=63 // pred_check_branch
        %1100 = sbr.rel (%p424) target = $region88
      $region87: #{tpu_custom_call.1} parent=63 // pred_region
        %v1101 = vpack.c.bf16 %v1060, %v1059
        %v1103 = vunpack.c.l.b16 %v1101
        %v1104 = vunpack.c.h.b16 %v1101
        %v1105 = vpack.c.b16 %v1103, %v1103
        %v1106 = vpack.c.b16 %v1104, %v1104
        %1109 = vst [vmem:[#allocation4] sm:$0xf] %v1105
        %vm1110 = vcmask 1041408
        %vm1111 = vsmask.f32 1280
        %vm1112 = vmand %vm1110, %vm1111
        %v1113 = vld [vmem:[#allocation4 + $0x4] sm:$0x3]
        %v1114 = vsel %vm1112, %v1106, %v1113
        %1115 = vst [vmem:[#allocation4 + $0x4] sm:$0x3] %v1114
      $region88: #{tpu_custom_call.1} parent=63 // pred_fallthru
        _
      %v1116 = vld [vmem:[#allocation4] sm:$0xf]
      %v1117 = vld [vmem:[#allocation4 + $0x4] sm:$0x1]
      %v1118 = vld [vmem:[#allocation4] sm:$0xe]
      %v1119 = vld [vmem:[#allocation4 + $0x4] sm:$0x3]
      %v1122 = vunpack.c.l.b16 %v1116
      %v1123 = vunpack.c.l.b16 %v1117
      %v1124 = vpack.c.b16 %v1123, %v1122
      %v1127 = vshrl.u32 %v1124, 16
      %v1129 = vshll.u32 %v1124, 16
      %v1131 = vrot.slane %v1129, 1
      %v1132 = vor.u32 %v1127, %v1131
      %v1136 = vunpack.c.l.b16 %v1118
      %v1137 = vunpack.c.l.b16 %v1119
      %v1138 = vpack.c.b16 %v1137, %v1136
      %v1139 = vrot.slane %v1138, 1
      %v1141 = vld [vmem:[%s7] sm:$0xf]
      %v1142 = vld [vmem:[%s7 + $0x4] sm:$0xf]
      %v1143 = vld [vmem:[%s7 + $0x8] sm:$0xf]
      %v1144 = vld [vmem:[%s7 + $0xc] sm:$0xf]
      %v1145 = vld [vmem:[%s7 + $0x10] sm:$0xf]
      %v1146 = vld [vmem:[%s7 + $0x14] sm:$0xf]
      %v1147 = vld [vmem:[%s7 + $0x18] sm:$0xf]
      %v1148 = vld [vmem:[%s7 + $0x1c] sm:$0xf]
      %v1149 = vld [vmem:[%s7 + $0x20] sm:$0xf]
      %v1150 = vld [vmem:[%s7 + $0x24] sm:$0xf]
      %v1151 = vld [vmem:[%s7 + $0x28] sm:$0xf]
      %v1152 = vld [vmem:[%s7 + $0x2c] sm:$0xf]
      %v1153 = vld [vmem:[%s7 + $0x30] sm:$0xf]
      %v1154 = vld [vmem:[%s7 + $0x34] sm:$0xf]
      %v1155 = vld [vmem:[%s7 + $0x38] sm:$0xf]
      %v1156 = vld [vmem:[%s7 + $0x3c] sm:$0xf]
      %v1157 = vld [vmem:[%s7 + $0x40] sm:$0xf]
      %v1158 = vld [vmem:[%s7 + $0x44] sm:$0xf]
      %v1159 = vld [vmem:[%s7 + $0x48] sm:$0xf]
      %v1160 = vld [vmem:[%s7 + $0x4c] sm:$0xf]
      %v1161 = vld [vmem:[%s7 + $0x50] sm:$0xf]
      %v1162 = vld [vmem:[%s7 + $0x54] sm:$0xf]
      %v1163 = vld [vmem:[%s7 + $0x58] sm:$0xf]
      %v1164 = vld [vmem:[%s7 + $0x5c] sm:$0xf]
      %v1165 = vld [vmem:[%s7 + $0x60] sm:$0xf]
      %v1166 = vld [vmem:[%s7 + $0x64] sm:$0xf]
      %v1167 = vld [vmem:[%s7 + $0x68] sm:$0xf]
      %v1168 = vld [vmem:[%s7 + $0x6c] sm:$0xf]
      %v1169 = vld [vmem:[%s7 + $0x70] sm:$0xf]
      %v1170 = vld [vmem:[%s7 + $0x74] sm:$0xf]
      %v1171 = vld [vmem:[%s7 + $0x78] sm:$0xf]
      %v1172 = vld [vmem:[%s7 + $0x7c] sm:$0xf]
      %v1173 = vld [vmem:[%s7 + $0x80] sm:$0xf]
      %v1174 = vld [vmem:[%s7 + $0x84] sm:$0xf]
      %v1175 = vld [vmem:[%s7 + $0x88] sm:$0xf]
      %v1176 = vld [vmem:[%s7 + $0x8c] sm:$0xf]
      %v1177 = vld [vmem:[%s7 + $0x90] sm:$0xf]
      %v1178 = vld [vmem:[%s7 + $0x94] sm:$0xf]
      %v1179 = vld [vmem:[%s7 + $0x98] sm:$0xf]
      %v1180 = vld [vmem:[%s7 + $0x9c] sm:$0xf]
      %v1181 = vld [vmem:[%s7 + $0xa0] sm:$0xf]
      %v1182 = vld [vmem:[%s7 + $0xa4] sm:$0xf]
      %v1183 = vld [vmem:[%s7 + $0xa8] sm:$0xf]
      %v1184 = vld [vmem:[%s7 + $0xac] sm:$0xf]
      %v1185 = vld [vmem:[%s7 + $0xb0] sm:$0xf]
      %v1186 = vld [vmem:[%s7 + $0xb4] sm:$0xf]
      %v1187 = vld [vmem:[%s7 + $0xb8] sm:$0xf]
      %v1188 = vld [vmem:[%s7 + $0xbc] sm:$0xf]
      %v1189 = vld [vmem:[%s8] sm:$0x1]
      %v1191 = vlaneseq
      %v1192 = vshrl.u32 %v1191, 7
      %v1193 = vsub.s32 0, %v1192
      %v1194 = vrot.slane %v1189, %v1193
      %v1244 = vunpack.c.l.b16 %v1141
      %v1245 = vunpack.c.l.b16 %v1142
      %v1246 = vunpack.c.l.b16 %v1143
      %v1247 = vunpack.c.l.b16 %v1144
      %v1248 = vunpack.c.l.b16 %v1145
      %v1249 = vunpack.c.l.b16 %v1146
      %v1250 = vunpack.c.l.b16 %v1147
      %v1251 = vunpack.c.l.b16 %v1148
      %v1252 = vunpack.c.l.b16 %v1149
      %v1253 = vunpack.c.l.b16 %v1150
      %v1254 = vunpack.c.l.b16 %v1151
      %v1255 = vunpack.c.l.b16 %v1152
      %v1256 = vunpack.c.l.b16 %v1153
      %v1257 = vunpack.c.l.b16 %v1154
      %v1258 = vunpack.c.l.b16 %v1155
      %v1259 = vunpack.c.l.b16 %v1156
      %v1260 = vunpack.c.l.b16 %v1157
      %v1261 = vunpack.c.l.b16 %v1158
      %v1262 = vunpack.c.l.b16 %v1159
      %v1263 = vunpack.c.l.b16 %v1160
      %v1264 = vunpack.c.l.b16 %v1161
      %v1265 = vunpack.c.l.b16 %v1162
      %v1266 = vunpack.c.l.b16 %v1163
      %v1267 = vunpack.c.l.b16 %v1164
      %v1268 = vunpack.c.l.b16 %v1165
      %v1269 = vunpack.c.l.b16 %v1166
      %v1270 = vunpack.c.l.b16 %v1167
      %v1271 = vunpack.c.l.b16 %v1168
      %v1272 = vunpack.c.l.b16 %v1169
      %v1273 = vunpack.c.l.b16 %v1170
      %v1274 = vunpack.c.l.b16 %v1171
      %v1275 = vunpack.c.l.b16 %v1172
      %v1276 = vunpack.c.l.b16 %v1173
      %v1277 = vunpack.c.l.b16 %v1174
      %v1278 = vunpack.c.l.b16 %v1175
      %v1279 = vunpack.c.l.b16 %v1176
      %v1280 = vunpack.c.l.b16 %v1177
      %v1281 = vunpack.c.l.b16 %v1178
      %v1282 = vunpack.c.l.b16 %v1179
      %v1283 = vunpack.c.l.b16 %v1180
      %v1284 = vunpack.c.l.b16 %v1181
      %v1285 = vunpack.c.l.b16 %v1182
      %v1286 = vunpack.c.l.b16 %v1183
      %v1287 = vunpack.c.l.b16 %v1184
      %v1288 = vunpack.c.l.b16 %v1185
      %v1289 = vunpack.c.l.b16 %v1186
      %v1290 = vunpack.c.l.b16 %v1187
      %v1291 = vunpack.c.l.b16 %v1188
      %v1292 = vpack.c.b16 %v1245, %v1244
      %v1293 = vpack.c.b16 %v1247, %v1246
      %v1294 = vpack.c.b16 %v1249, %v1248
      %v1295 = vpack.c.b16 %v1251, %v1250
      %v1296 = vpack.c.b16 %v1253, %v1252
      %v1297 = vpack.c.b16 %v1255, %v1254
      %v1298 = vpack.c.b16 %v1257, %v1256
      %v1299 = vpack.c.b16 %v1259, %v1258
      %v1300 = vpack.c.b16 %v1261, %v1260
      %v1301 = vpack.c.b16 %v1263, %v1262
      %v1302 = vpack.c.b16 %v1265, %v1264
      %v1303 = vpack.c.b16 %v1267, %v1266
      %v1304 = vpack.c.b16 %v1269, %v1268
      %v1305 = vpack.c.b16 %v1271, %v1270
      %v1306 = vpack.c.b16 %v1273, %v1272
      %v1307 = vpack.c.b16 %v1275, %v1274
      %v1308 = vpack.c.b16 %v1277, %v1276
      %v1309 = vpack.c.b16 %v1279, %v1278
      %v1310 = vpack.c.b16 %v1281, %v1280
      %v1311 = vpack.c.b16 %v1283, %v1282
      %v1312 = vpack.c.b16 %v1285, %v1284
      %v1313 = vpack.c.b16 %v1287, %v1286
      %v1314 = vpack.c.b16 %v1289, %v1288
      %v1315 = vpack.c.b16 %v1291, %v1290
      %1340 = vmatprep.subr.bf16.mxu0 0
      %1341 = vmatpush1.bf16.msra.mxu0 %v1292
      %1342 = vmatprep.subr.bf16.mxu0 0
      %1343 = vmatpush1.bf16.msra.mxu0 %v1293
      %1344 = vmatprep.subr.bf16.mxu0 0
      %1345 = vmatpush1.bf16.msra.mxu0 %v1294
      %1346 = vmatprep.subr.bf16.mxu0 0
      %1347 = vmatpush1.bf16.msra.mxu0 %v1295
      %1348 = vmatprep.subr.bf16.mxu0 0
      %1349 = vmatpush1.bf16.msra.mxu0 %v1296
      %1350 = vmatprep.subr.bf16.mxu0 0
      %1351 = vmatpush1.bf16.msra.mxu0 %v1297
      %1352 = vmatprep.subr.bf16.mxu0 0
      %1353 = vmatpush1.bf16.msra.mxu0 %v1298
      %1354 = vmatprep.subr.bf16.mxu0 0
      %1355 = vmatpush1.bf16.msra.mxu0 %v1299
      %1356 = vmatprep.subr.bf16.mxu0 0
      %1357 = vmatpush1.bf16.msra.mxu0 %v1300
      %1358 = vmatprep.subr.bf16.mxu0 0
      %1359 = vmatpush1.bf16.msra.mxu0 %v1301
      %1360 = vmatprep.subr.bf16.mxu0 0
      %1361 = vmatpush1.bf16.msra.mxu0 %v1302
      %1362 = vmatprep.subr.bf16.mxu0 0
      %1363 = vmatpush1.bf16.msra.mxu0 %v1303
      %1364 = vmatprep.subr.bf16.mxu0 0
      %1365 = vmatpush1.bf16.msra.mxu0 %v1304
      %1366 = vmatprep.subr.bf16.mxu0 0
      %1367 = vmatpush1.bf16.msra.mxu0 %v1305
      %1368 = vmatprep.subr.bf16.mxu0 0
      %1369 = vmatpush1.bf16.msra.mxu0 %v1306
      %1370 = vmatprep.subr.bf16.mxu0 0
      %1371 = vmatpush1.bf16.msra.mxu0 %v1307
      %1372 = vmatprep.mubr.bf16.mxu0 %v1132
      %1373 = vmatmul.mubr.bf16.gmra.mrb[0].mxu0 %v1124
      %v1374 = vpop.f32.mrb[0].mxu0
      %v1375 = vadd.f32 %v1194, %v1374
      %v1376 = vpop.f32.mrb[0].mxu0
      %v1377 = vpop.f32.mrb[0].mxu0
      %v1378 = vadd.f32 %v1194, %v1377
      %v1379 = vpop.f32.mrb[0].mxu0
      %1380 = vdwg.mxu0
      %1381 = vmatprep.subr.bf16.mxu0 0
      %1382 = vmatpush1.bf16.msra.mxu0 %v1308
      %1383 = vmatprep.subr.bf16.mxu0 0
      %1384 = vmatpush1.bf16.msra.mxu0 %v1309
      %1385 = vmatprep.subr.bf16.mxu0 0
      %1386 = vmatpush1.bf16.msra.mxu0 %v1310
      %1387 = vmatprep.subr.bf16.mxu0 0
      %1388 = vmatpush1.bf16.msra.mxu0 %v1311
      %1389 = vmatprep.subr.bf16.mxu0 0
      %1390 = vmatpush1.bf16.msra.mxu0 %v1312
      %1391 = vmatprep.subr.bf16.mxu0 0
      %1392 = vmatpush1.bf16.msra.mxu0 %v1313
      %1393 = vmatprep.subr.bf16.mxu0 0
      %1394 = vmatpush1.bf16.msra.mxu0 %v1314
      %1395 = vmatprep.subr.bf16.mxu0 0
      %1396 = vmatpush1.bf16.msra.mxu0 %v1315
      %1397 = vmatprep.subr.bf16.mxu0 0
      %1398 = vmatpush1.bf16.msra.mxu0 0
      %1399 = vmatprep.subr.bf16.mxu0 0
      %1400 = vmatpush1.bf16.msra.mxu0 0
      %1401 = vmatprep.subr.bf16.mxu0 0
      %1402 = vmatpush1.bf16.msra.mxu0 0
      %1403 = vmatprep.subr.bf16.mxu0 0
      %1404 = vmatpush1.bf16.msra.mxu0 0
      %1405 = vmatprep.subr.bf16.mxu0 0
      %1406 = vmatpush1.bf16.msra.mxu0 0
      %1407 = vmatprep.subr.bf16.mxu0 0
      %1408 = vmatpush1.bf16.msra.mxu0 0
      %1409 = vmatprep.subr.bf16.mxu0 0
      %1410 = vmatpush1.bf16.msra.mxu0 0
      %1411 = vmatprep.subr.bf16.mxu0 0
      %1412 = vmatpush1.bf16.msra.mxu0 0
      %1413 = vmatprep.mubr.bf16.mxu0 0
      %1414 = vmatmul.mubr.bf16.gmra.mrb[0].mxu0 %v1139
      %v1415 = vpop.f32.mrb[0].mxu0
      %v1416 = vadd.f32 %v1375, %v1415
      %v1417 = vpop.f32.mrb[0].mxu0
      %v1418 = vpop.f32.mrb[0].mxu0
      %v1419 = vadd.f32 %v1378, %v1418
      %v1420 = vpop.f32.mrb[0].mxu0
      %1421 = vdwg.mxu0
      %v1422 = vxor.u32 %v1416, 2147483648
      %v1423 = vxor.u32 %v1419, 2147483648
      %v1424 = vmul.f32 %v1422, 1.442695
      %v1425 = vpow.pop %v1424
      %v1426 = vmul.f32 %v1423, 1.442695
      %v1427 = vpow.pop %v1426
      %v1428 = vadd.f32 %v1425, 1.0
      %v1429 = vadd.f32 %v1427, 1.0
      %v1430 = vrcp.pop %v1428
      %v1431 = vmul.f32 1.0, %v1430
      %v1432 = vrcp.pop %v1429
      %v1433 = vmul.f32 1.0, %v1432
      %v1434 = vmul.f32 %v1416, %v1431
      %v1435 = vmul.f32 %v1419, %v1433
      %s1436 = ssub.s32 %s423, 1
      // Predicated region
      $region89: #{tpu_custom_call.1} parent=63 // pred_check
        %p1437 = pneg %p424
      $region90: #{tpu_custom_call.1} parent=63 // pred_check_branch
        %1439 = sbr.rel (%p1437) target = $region92
      $region91: #{tpu_custom_call.1} parent=63 // pred_region
        %v1440 = vlaneseq
        %v1441 = vshrl.u32 %v1440, 7
        %v1442 = vadd.s32 %v1441, 8
        %v1443 = vstv %s1436
        %v1444 = vadd.s32 %v1443, %v1441
        %v1445 = vadd.s32 %v1443, %v1442
        %vm1446 = vcmp.ge.s32.totalorder %v1444, 0
        %vm1447 = vcmp.ge.s32.totalorder %v1445, 0
        %vm1448 = vcmp.lt.s32.totalorder %v1444, 8
        %vm1449 = vcmp.lt.s32.totalorder %v1445, 8
        %vm1450 = vmand %vm1446, %vm1448
        %vm1451 = vmand %vm1447, %vm1449
        %v1452 = vsel %vm1450, 1, 0
        %v1453 = vsel %vm1451, 1, 0
        %vm1454 = vcmp.eq.s32.totalorder %v1452, 1
        %vm1455 = vcmp.eq.s32.totalorder %v1453, 1
        %v1456 = vsel %vm1454, %v1434, 0.0
        %v1457 = vsel %vm1455, %v1435, 0.0
        %1458 = vst [vmem:[#allocation5] sm:$0xff] %v1456
        %1459 = vst [vmem:[#allocation5 + $0x8] sm:$0x1] %v1457
      $region92: #{tpu_custom_call.1} parent=63 // pred_fallthru
        _
      %p1460 = pneg %p424
      // Predicated region
      $region93: #{tpu_custom_call.1} parent=63 // pred_check
        _
      $region94: #{tpu_custom_call.1} parent=63 // pred_check_branch
        %1462 = sbr.rel (%p424) target = $region96
      $region95: #{tpu_custom_call.1} parent=63 // pred_region
        %1463 = vst [vmem:[#allocation5] sm:$0xff] %v1434
        %1464 = vst [vmem:[#allocation5 + $0x8] sm:$0x1] %v1435
      $region96: #{tpu_custom_call.1} parent=63 // pred_fallthru
        _
      %v1465 = vld [vmem:[#allocation5] ss:$2 sm:$0xf]
      %s1466 = scalar_lea.vmem [#allocation5], 1
      %v1467 = vld [vmem:[%s1466] ss:$2 sm:$0xf]
      %s1468 = scalar_lea.vmem [#allocation5], 2
      %v1469 = vld [vmem:[%s1468] ss:$2 sm:$0xf]
      %v1470 = vpack.c.bf16 %v1465, %v1465
      %v1471 = vpack.c.bf16 %v1467, %v1467
      %v1472 = vpack.c.bf16 %v1469, %v1469
      %v1473 = vld [vmem:[%s9] sm:$0xff]
      %v1474 = vld [vmem:[%s9 + $0x8] sm:$0xff]
      %v1475 = vld [vmem:[%s9 + $0x10] sm:$0xff]
      %v1476 = vld [vmem:[%s9 + $0x18] sm:$0xff]
      %v1477 = vld [vmem:[%s9 + $0x20] sm:$0xff]
      %v1478 = vld [vmem:[%s9 + $0x28] sm:$0xff]
      %v1479 = vld [vmem:[%s9 + $0x30] sm:$0xff]
      %v1480 = vld [vmem:[%s9 + $0x38] sm:$0xff]
      %v1481 = vld [vmem:[%s9 + $0x40] sm:$0xff]
      %v1482 = vld [vmem:[%s9 + $0x48] sm:$0xff]
      %v1483 = vld [vmem:[%s9 + $0x50] sm:$0xff]
      %v1484 = vld [vmem:[%s9 + $0x58] sm:$0xff]
      %v1485 = vld [vmem:[%s9 + $0x60] sm:$0xff]
      %v1486 = vld [vmem:[%s9 + $0x68] sm:$0xff]
      %v1487 = vld [vmem:[%s9 + $0x70] sm:$0xff]
      %v1488 = vld [vmem:[%s9 + $0x78] sm:$0xff]
      %v1489 = vld [vmem:[%s9 + $0x80] sm:$0xff]
      %v1490 = vld [vmem:[%s9 + $0x88] sm:$0xff]
      %v1491 = vld [vmem:[%s9 + $0x90] sm:$0xff]
      %v1492 = vld [vmem:[%s9 + $0x98] sm:$0xff]
      %v1493 = vld [vmem:[%s9 + $0xa0] sm:$0xff]
      %v1494 = vld [vmem:[%s9 + $0xa8] sm:$0xff]
      %v1495 = vld [vmem:[%s9 + $0xb0] sm:$0xff]
      %v1496 = vld [vmem:[%s9 + $0xb8] sm:$0xff]
      %v1497 = vld [vmem:[%s9 + $0xc0] sm:$0xff]
      %v1498 = vld [vmem:[%s9 + $0xc8] sm:$0xff]
      %v1499 = vld [vmem:[%s9 + $0xd0] sm:$0xff]
      %v1500 = vld [vmem:[%s9 + $0xd8] sm:$0xff]
      %v1501 = vld [vmem:[%s9 + $0xe0] sm:$0xff]
      %v1502 = vld [vmem:[%s9 + $0xe8] sm:$0xff]
      %v1503 = vld [vmem:[%s9 + $0xf0] sm:$0xff]
      %v1504 = vld [vmem:[%s9 + $0xf8] sm:$0xff]
      %v1505 = vld [vmem:[%s9 + $0x100] sm:$0xff]
      %v1506 = vld [vmem:[%s9 + $0x108] sm:$0xff]
      %v1507 = vld [vmem:[%s9 + $0x110] sm:$0xff]
      %v1508 = vld [vmem:[%s9 + $0x118] sm:$0xff]
      %v1509 = vld [vmem:[%s9 + $0x120] sm:$0xff]
      %v1510 = vld [vmem:[%s9 + $0x128] sm:$0xff]
      %v1511 = vld [vmem:[%s9 + $0x130] sm:$0xff]
      %v1512 = vld [vmem:[%s9 + $0x138] sm:$0xff]
      %v1513 = vld [vmem:[%s9 + $0x140] sm:$0xff]
      %v1514 = vld [vmem:[%s9 + $0x148] sm:$0xff]
      %v1515 = vld [vmem:[%s9 + $0x150] sm:$0xff]
      %v1516 = vld [vmem:[%s9 + $0x158] sm:$0xff]
      %v1517 = vld [vmem:[%s9 + $0x160] sm:$0xff]
      %v1518 = vld [vmem:[%s9 + $0x168] sm:$0xff]
      %v1519 = vld [vmem:[%s9 + $0x170] sm:$0xff]
      %v1520 = vld [vmem:[%s9 + $0x178] sm:$0xff]
      %v1521 = vld [vmem:[%s10] sm:$0x3]
      %v1523 = vlaneseq
      %v1524 = vshrl.u32 %v1523, 7
      %v1525 = vsub.s32 0, %v1524
      %v1526 = vrot.slane %v1521, %v1525
      %v1527 = vlaneseq
      %v1528 = vshrl.u32 %v1527, 7
      %v1529 = vsub.s32 1, %v1528
      %v1530 = vrot.slane %v1521, %v1529
      %v1581 = vunpack.c.l.b16 %v1473
      %v1582 = vunpack.c.h.b16 %v1473
      %v1583 = vunpack.c.l.b16 %v1474
      %v1584 = vunpack.c.h.b16 %v1474
      %v1585 = vunpack.c.l.b16 %v1475
      %v1586 = vunpack.c.h.b16 %v1475
      %v1587 = vunpack.c.l.b16 %v1476
      %v1588 = vunpack.c.h.b16 %v1476
      %v1589 = vunpack.c.l.b16 %v1477
      %v1590 = vunpack.c.h.b16 %v1477
      %v1591 = vunpack.c.l.b16 %v1478
      %v1592 = vunpack.c.h.b16 %v1478
      %v1593 = vunpack.c.l.b16 %v1479
      %v1594 = vunpack.c.h.b16 %v1479
      %v1595 = vunpack.c.l.b16 %v1480
      %v1596 = vunpack.c.h.b16 %v1480
      %v1597 = vunpack.c.l.b16 %v1481
      %v1598 = vunpack.c.h.b16 %v1481
      %v1599 = vunpack.c.l.b16 %v1482
      %v1600 = vunpack.c.h.b16 %v1482
      %v1601 = vunpack.c.l.b16 %v1483
      %v1602 = vunpack.c.h.b16 %v1483
      %v1603 = vunpack.c.l.b16 %v1484
      %v1604 = vunpack.c.h.b16 %v1484
      %v1605 = vunpack.c.l.b16 %v1485
      %v1606 = vunpack.c.h.b16 %v1485
      %v1607 = vunpack.c.l.b16 %v1486
      %v1608 = vunpack.c.h.b16 %v1486
      %v1609 = vunpack.c.l.b16 %v1487
      %v1610 = vunpack.c.h.b16 %v1487
      %v1611 = vunpack.c.l.b16 %v1488
      %v1612 = vunpack.c.h.b16 %v1488
      %v1613 = vunpack.c.l.b16 %v1489
      %v1614 = vunpack.c.h.b16 %v1489
      %v1615 = vunpack.c.l.b16 %v1490
      %v1616 = vunpack.c.h.b16 %v1490
      %v1617 = vunpack.c.l.b16 %v1491
      %v1618 = vunpack.c.h.b16 %v1491
      %v1619 = vunpack.c.l.b16 %v1492
      %v1620 = vunpack.c.h.b16 %v1492
      %v1621 = vunpack.c.l.b16 %v1493
      %v1622 = vunpack.c.h.b16 %v1493
      %v1623 = vunpack.c.l.b16 %v1494
      %v1624 = vunpack.c.h.b16 %v1494
      %v1625 = vunpack.c.l.b16 %v1495
      %v1626 = vunpack.c.h.b16 %v1495
      %v1627 = vunpack.c.l.b16 %v1496
      %v1628 = vunpack.c.h.b16 %v1496
      %v1629 = vunpack.c.l.b16 %v1497
      %v1630 = vunpack.c.h.b16 %v1497
      %v1631 = vunpack.c.l.b16 %v1498
      %v1632 = vunpack.c.h.b16 %v1498
      %v1633 = vunpack.c.l.b16 %v1499
      %v1634 = vunpack.c.h.b16 %v1499
      %v1635 = vunpack.c.l.b16 %v1500
      %v1636 = vunpack.c.h.b16 %v1500
      %v1637 = vunpack.c.l.b16 %v1501
      %v1638 = vunpack.c.h.b16 %v1501
      %v1639 = vunpack.c.l.b16 %v1502
      %v1640 = vunpack.c.h.b16 %v1502
      %v1641 = vunpack.c.l.b16 %v1503
      %v1642 = vunpack.c.h.b16 %v1503
      %v1643 = vunpack.c.l.b16 %v1504
      %v1644 = vunpack.c.h.b16 %v1504
      %v1645 = vunpack.c.l.b16 %v1505
      %v1646 = vunpack.c.h.b16 %v1505
      %v1647 = vunpack.c.l.b16 %v1506
      %v1648 = vunpack.c.h.b16 %v1506
      %v1649 = vunpack.c.l.b16 %v1507
      %v1650 = vunpack.c.h.b16 %v1507
      %v1651 = vunpack.c.l.b16 %v1508
      %v1652 = vunpack.c.h.b16 %v1508
      %v1653 = vunpack.c.l.b16 %v1509
      %v1654 = vunpack.c.h.b16 %v1509
      %v1655 = vunpack.c.l.b16 %v1510
      %v1656 = vunpack.c.h.b16 %v1510
      %v1657 = vunpack.c.l.b16 %v1511
      %v1658 = vunpack.c.h.b16 %v1511
      %v1659 = vunpack.c.l.b16 %v1512
      %v1660 = vunpack.c.h.b16 %v1512
      %v1661 = vunpack.c.l.b16 %v1513
      %v1662 = vunpack.c.h.b16 %v1513
      %v1663 = vunpack.c.l.b16 %v1514
      %v1664 = vunpack.c.h.b16 %v1514
      %v1665 = vunpack.c.l.b16 %v1515
      %v1666 = vunpack.c.h.b16 %v1515
      %v1667 = vunpack.c.l.b16 %v1516
      %v1668 = vunpack.c.h.b16 %v1516
      %v1669 = vunpack.c.l.b16 %v1517
      %v1670 = vunpack.c.h.b16 %v1517
      %v1671 = vunpack.c.l.b16 %v1518
      %v1672 = vunpack.c.h.b16 %v1518
      %v1673 = vunpack.c.l.b16 %v1519
      %v1674 = vunpack.c.h.b16 %v1519
      %v1675 = vunpack.c.l.b16 %v1520
      %v1676 = vunpack.c.h.b16 %v1520
      %v1677 = vpack.c.b16 %v1583, %v1581
      %v1678 = vpack.c.b16 %v1584, %v1582
      %v1679 = vpack.c.b16 %v1587, %v1585
      %v1680 = vpack.c.b16 %v1588, %v1586
      %v1681 = vpack.c.b16 %v1591, %v1589
      %v1682 = vpack.c.b16 %v1592, %v1590
      %v1683 = vpack.c.b16 %v1595, %v1593
      %v1684 = vpack.c.b16 %v1596, %v1594
      %v1685 = vpack.c.b16 %v1599, %v1597
      %v1686 = vpack.c.b16 %v1600, %v1598
      %v1687 = vpack.c.b16 %v1603, %v1601
      %v1688 = vpack.c.b16 %v1604, %v1602
      %v1689 = vpack.c.b16 %v1607, %v1605
      %v1690 = vpack.c.b16 %v1608, %v1606
      %v1691 = vpack.c.b16 %v1611, %v1609
      %v1692 = vpack.c.b16 %v1612, %v1610
      %v1693 = vpack.c.b16 %v1615, %v1613
      %v1694 = vpack.c.b16 %v1616, %v1614
      %v1695 = vpack.c.b16 %v1619, %v1617
      %v1696 = vpack.c.b16 %v1620, %v1618
      %v1697 = vpack.c.b16 %v1623, %v1621
      %v1698 = vpack.c.b16 %v1624, %v1622
      %v1699 = vpack.c.b16 %v1627, %v1625
      %v1700 = vpack.c.b16 %v1628, %v1626
      %v1701 = vpack.c.b16 %v1631, %v1629
      %v1702 = vpack.c.b16 %v1632, %v1630
      %v1703 = vpack.c.b16 %v1635, %v1633
      %v1704 = vpack.c.b16 %v1636, %v1634
      %v1705 = vpack.c.b16 %v1639, %v1637
      %v1706 = vpack.c.b16 %v1640, %v1638
      %v1707 = vpack.c.b16 %v1643, %v1641
      %v1708 = vpack.c.b16 %v1644, %v1642
      %v1709 = vpack.c.b16 %v1647, %v1645
      %v1710 = vpack.c.b16 %v1648, %v1646
      %v1711 = vpack.c.b16 %v1651, %v1649
      %v1712 = vpack.c.b16 %v1652, %v1650
      %v1713 = vpack.c.b16 %v1655, %v1653
      %v1714 = vpack.c.b16 %v1656, %v1654
      %v1715 = vpack.c.b16 %v1659, %v1657
      %v1716 = vpack.c.b16 %v1660, %v1658
      %v1717 = vpack.c.b16 %v1663, %v1661
      %v1718 = vpack.c.b16 %v1664, %v1662
      %v1719 = vpack.c.b16 %v1667, %v1665
      %v1720 = vpack.c.b16 %v1668, %v1666
      %v1721 = vpack.c.b16 %v1671, %v1669
      %v1722 = vpack.c.b16 %v1672, %v1670
      %v1723 = vpack.c.b16 %v1675, %v1673
      %v1724 = vpack.c.b16 %v1676, %v1674
      %1773 = vmatprep.subr.bf16.mxu0 %v1678
      %1774 = vmatpush1.bf16.msra.mxu0 %v1677
      %1775 = vmatprep.subr.bf16.mxu0 %v1680
      %1776 = vmatpush1.bf16.msra.mxu0 %v1679
      %1777 = vmatprep.subr.bf16.mxu0 %v1682
      %1778 = vmatpush1.bf16.msra.mxu0 %v1681
      %1779 = vmatprep.subr.bf16.mxu0 %v1684
      %1780 = vmatpush1.bf16.msra.mxu0 %v1683
      %1781 = vmatprep.subr.bf16.mxu0 %v1686
      %1782 = vmatpush1.bf16.msra.mxu0 %v1685
      %1783 = vmatprep.subr.bf16.mxu0 %v1688
      %1784 = vmatpush1.bf16.msra.mxu0 %v1687
      %1785 = vmatprep.subr.bf16.mxu0 %v1690
      %1786 = vmatpush1.bf16.msra.mxu0 %v1689
      %1787 = vmatprep.subr.bf16.mxu0 %v1692
      %1788 = vmatpush1.bf16.msra.mxu0 %v1691
      %1789 = vmatprep.subr.bf16.mxu0 %v1694
      %1790 = vmatpush1.bf16.msra.mxu0 %v1693
      %1791 = vmatprep.subr.bf16.mxu0 %v1696
      %1792 = vmatpush1.bf16.msra.mxu0 %v1695
      %1793 = vmatprep.subr.bf16.mxu0 %v1698
      %1794 = vmatpush1.bf16.msra.mxu0 %v1697
      %1795 = vmatprep.subr.bf16.mxu0 %v1700
      %1796 = vmatpush1.bf16.msra.mxu0 %v1699
      %1797 = vmatprep.subr.bf16.mxu0 %v1702
      %1798 = vmatpush1.bf16.msra.mxu0 %v1701
      %1799 = vmatprep.subr.bf16.mxu0 %v1704
      %1800 = vmatpush1.bf16.msra.mxu0 %v1703
      %1801 = vmatprep.subr.bf16.mxu0 %v1706
      %1802 = vmatpush1.bf16.msra.mxu0 %v1705
      %1803 = vmatprep.subr.bf16.mxu0 %v1708
      %1804 = vmatpush1.bf16.msra.mxu0 %v1707
      %1805 = vmatprep.mubr.bf16.mxu0 %v1471
      %1806 = vmatmul.mubr.bf16.gmra.mrb[0].mxu0 %v1470
      %v1807 = vpop.f32.mrb[0].mxu0
      %v1808 = vadd.f32 %v1526, %v1807
      %v1809 = vpop.f32.mrb[0].mxu0
      %v1810 = vadd.f32 %v1530, %v1809
      %v1811 = vpop.f32.mrb[0].mxu0
      %v1812 = vpop.f32.mrb[0].mxu0
      %1813 = vdwg.mxu0
      %1814 = vmatprep.subr.bf16.mxu0 %v1710
      %1815 = vmatpush1.bf16.msra.mxu0 %v1709
      %1816 = vmatprep.subr.bf16.mxu0 %v1712
      %1817 = vmatpush1.bf16.msra.mxu0 %v1711
      %1818 = vmatprep.subr.bf16.mxu0 %v1714
      %1819 = vmatpush1.bf16.msra.mxu0 %v1713
      %1820 = vmatprep.subr.bf16.mxu0 %v1716
      %1821 = vmatpush1.bf16.msra.mxu0 %v1715
      %1822 = vmatprep.subr.bf16.mxu0 %v1718
      %1823 = vmatpush1.bf16.msra.mxu0 %v1717
      %1824 = vmatprep.subr.bf16.mxu0 %v1720
      %1825 = vmatpush1.bf16.msra.mxu0 %v1719
      %1826 = vmatprep.subr.bf16.mxu0 %v1722
      %1827 = vmatpush1.bf16.msra.mxu0 %v1721
      %1828 = vmatprep.subr.bf16.mxu0 %v1724
      %1829 = vmatpush1.bf16.msra.mxu0 %v1723
      %1830 = vmatprep.subr.bf16.mxu0 0
      %1831 = vmatpush1.bf16.msra.mxu0 0
      %1832 = vmatprep.subr.bf16.mxu0 0
      %1833 = vmatpush1.bf16.msra.mxu0 0
      %1834 = vmatprep.subr.bf16.mxu0 0
      %1835 = vmatpush1.bf16.msra.mxu0 0
      %1836 = vmatprep.subr.bf16.mxu0 0
      %1837 = vmatpush1.bf16.msra.mxu0 0
      %1838 = vmatprep.subr.bf16.mxu0 0
      %1839 = vmatpush1.bf16.msra.mxu0 0
      %1840 = vmatprep.subr.bf16.mxu0 0
      %1841 = vmatpush1.bf16.msra.mxu0 0
      %1842 = vmatprep.subr.bf16.mxu0 0
      %1843 = vmatpush1.bf16.msra.mxu0 0
      %1844 = vmatprep.subr.bf16.mxu0 0
      %1845 = vmatpush1.bf16.msra.mxu0 0
      %1846 = vmatprep.mubr.bf16.mxu0 0
      %1847 = vmatmul.mubr.bf16.gmra.mrb[0].mxu0 %v1472
      %v1848 = vpop.f32.mrb[0].mxu0
      %v1849 = vadd.f32 %v1808, %v1848
      %v1850 = vpop.f32.mrb[0].mxu0
      %v1851 = vadd.f32 %v1810, %v1850
      %v1852 = vpop.f32.mrb[0].mxu0
      %v1853 = vpop.f32.mrb[0].mxu0
      %1854 = vdwg.mxu0
      %1855 = vxpose.xlu0.b32.start [1/16] %v1849, 128
      %1856 = vxpose.xlu0.b32.cont [2/16] 0.0, 128
      %1857 = vxpose.xlu0.b32.cont [3/16] 0.0, 128
      %1858 = vxpose.xlu0.b32.cont [4/16] 0.0, 128
      %1859 = vxpose.xlu0.b32.cont [5/16] 0.0, 128
      %1860 = vxpose.xlu0.b32.cont [6/16] 0.0, 128
      %1861 = vxpose.xlu0.b32.cont [7/16] 0.0, 128
      %1862 = vxpose.xlu0.b32.cont [8/16] 0.0, 128
      %1863 = vxpose.xlu0.b32.cont [9/16] 0.0, 128
      %1864 = vxpose.xlu0.b32.cont [10/16] 0.0, 128
      %1865 = vxpose.xlu0.b32.cont [11/16] 0.0, 128
      %1866 = vxpose.xlu0.b32.cont [12/16] 0.0, 128
      %1867 = vxpose.xlu0.b32.cont [13/16] 0.0, 128
      %1868 = vxpose.xlu0.b32.cont [14/16] 0.0, 128
      %1869 = vxpose.xlu0.b32.cont [15/16] 0.0, 128
      %1870 = vxpose.xlu0.b32.end [16/16] 0.0, 128
      %v1871 = vpop.trf.xlu0
      %v1872 = vpop.trf.xlu0
      %v1873 = vpop.trf.xlu0
      %v1874 = vpop.trf.xlu0
      %v1875 = vpop.trf.xlu0
      %v1876 = vpop.trf.xlu0
      %v1877 = vpop.trf.xlu0
      %v1878 = vpop.trf.xlu0
      %v1879 = vpop.trf.xlu0
      %v1880 = vpop.trf.xlu0
      %v1881 = vpop.trf.xlu0
      %v1882 = vpop.trf.xlu0
      %v1883 = vpop.trf.xlu0
      %v1884 = vpop.trf.xlu0
      %v1885 = vpop.trf.xlu0
      %v1886 = vpop.trf.xlu0
      %1887 = vxpose.xlu0.b32.start [1/16] %v1851, 128
      %1888 = vxpose.xlu0.b32.cont [2/16] 0.0, 128
      %1889 = vxpose.xlu0.b32.cont [3/16] 0.0, 128
      %1890 = vxpose.xlu0.b32.cont [4/16] 0.0, 128
      %1891 = vxpose.xlu0.b32.cont [5/16] 0.0, 128
      %1892 = vxpose.xlu0.b32.cont [6/16] 0.0, 128
      %1893 = vxpose.xlu0.b32.cont [7/16] 0.0, 128
      %1894 = vxpose.xlu0.b32.cont [8/16] 0.0, 128
      %1895 = vxpose.xlu0.b32.cont [9/16] 0.0, 128
      %1896 = vxpose.xlu0.b32.cont [10/16] 0.0, 128
      %1897 = vxpose.xlu0.b32.cont [11/16] 0.0, 128
      %1898 = vxpose.xlu0.b32.cont [12/16] 0.0, 128
      %1899 = vxpose.xlu0.b32.cont [13/16] 0.0, 128
      %1900 = vxpose.xlu0.b32.cont [14/16] 0.0, 128
      %1901 = vxpose.xlu0.b32.cont [15/16] 0.0, 128
      %1902 = vxpose.xlu0.b32.end [16/16] 0.0, 128
      %v1903 = vpop.trf.xlu0
      %v1904 = vpop.trf.xlu0
      %v1905 = vpop.trf.xlu0
      %v1906 = vpop.trf.xlu0
      %v1907 = vpop.trf.xlu0
      %v1908 = vpop.trf.xlu0
      %v1909 = vpop.trf.xlu0
      %v1910 = vpop.trf.xlu0
      %v1911 = vpop.trf.xlu0
      %v1912 = vpop.trf.xlu0
      %v1913 = vpop.trf.xlu0
      %v1914 = vpop.trf.xlu0
      %v1915 = vpop.trf.xlu0
      %v1916 = vpop.trf.xlu0
      %v1917 = vpop.trf.xlu0
      %v1918 = vpop.trf.xlu0
      %1919 = vst.msk [vmem:[%s420] sm:$0xff] %vm474, %v1871
      %1920 = vst.msk [vmem:[%s420 + $0x8] sm:$0xff] %vm474, %v1872
      %1921 = vst.msk [vmem:[%s420 + $0x10] sm:$0xff] %vm474, %v1873
      %1922 = vst.msk [vmem:[%s420 + $0x18] sm:$0xff] %vm474, %v1874
      %1923 = vst.msk [vmem:[%s420 + $0x20] sm:$0xff] %vm474, %v1875
      %1924 = vst.msk [vmem:[%s420 + $0x28] sm:$0xff] %vm474, %v1876
      %1925 = vst.msk [vmem:[%s420 + $0x30] sm:$0xff] %vm474, %v1877
      %1926 = vst.msk [vmem:[%s420 + $0x38] sm:$0xff] %vm474, %v1878
      %1927 = vst.msk [vmem:[%s420 + $0x40] sm:$0xff] %vm474, %v1879
      %1928 = vst.msk [vmem:[%s420 + $0x48] sm:$0xff] %vm474, %v1880
      %1929 = vst.msk [vmem:[%s420 + $0x50] sm:$0xff] %vm474, %v1881
      %1930 = vst.msk [vmem:[%s420 + $0x58] sm:$0xff] %vm474, %v1882
      %1931 = vst.msk [vmem:[%s420 + $0x60] sm:$0xff] %vm474, %v1883
      %1932 = vst.msk [vmem:[%s420 + $0x68] sm:$0xff] %vm474, %v1884
      %1933 = vst.msk [vmem:[%s420 + $0x70] sm:$0xff] %vm474, %v1885
      %1934 = vst.msk [vmem:[%s420 + $0x78] sm:$0xff] %vm474, %v1886
      %1935 = vst.msk [vmem:[%s420 + $0x80] sm:$0xff] %vm474, %v1903
      %1936 = vst.msk [vmem:[%s420 + $0x88] sm:$0xff] %vm474, %v1904
      %1937 = vst.msk [vmem:[%s420 + $0x90] sm:$0xff] %vm474, %v1905
      %1938 = vst.msk [vmem:[%s420 + $0x98] sm:$0xff] %vm474, %v1906
      %1939 = vst.msk [vmem:[%s420 + $0xa0] sm:$0xff] %vm474, %v1907
      %1940 = vst.msk [vmem:[%s420 + $0xa8] sm:$0xff] %vm474, %v1908
      %1941 = vst.msk [vmem:[%s420 + $0xb0] sm:$0xff] %vm474, %v1909
      %1942 = vst.msk [vmem:[%s420 + $0xb8] sm:$0xff] %vm474, %v1910
      %p1943 = scmp.lt.s32.totalorder %s26, 1
      %s1944 = scalar_select %p1943, %s26, 1
      %p1945 = scmp.lt.s32.totalorder %s27, 0
      %s1946 = scalar_select %p1945, %s27, 0
      %s1947 = smul.addr %s1944, 24
      %s1948 = sadd.s32 %s1946, %s1947
      %s1949 = smul.addr %s1948, 8
      %s1950 = scalar_lea.vmem %s11, %s1949
      // Predicated region
      $region97: #{tpu_custom_call.1} parent=63 // pred_check
        %p1951 = pneg %p292
      $region98: #{tpu_custom_call.1} parent=63 // pred_check_branch
        %1953 = sbr.rel (%p1951) target = $region100
      $region99: #{tpu_custom_call.1} parent=63 // pred_region
        _
      $region100: #{tpu_custom_call.1} parent=63 // pred_fallthru
        _
    $region64: #{tpu_custom_call.1} parent=5 // pred_fallthru
      _
    %p1954 = scmp.le.s32.totalorder 2, %s17
    // Predicated region
    $region101: #{tpu_custom_call.1} parent=5 // pred_check
      %p1955 = pneg %p1954
    $region102: #{tpu_custom_call.1} parent=5 // pred_check_branch
      %1957 = sbr.rel (%p1955) target = $region104
    $region103: #{tpu_custom_call.1} parent=5 // pred_region
      %s1958 = ssub.s32 %s17, 2
      // Predicated region
      $region105: #{tpu_custom_call.1} parent=103 // pred_check
        %p1959 = pneg %p298
      $region106: #{tpu_custom_call.1} parent=103 // pred_check_branch
        %1961 = sbr.rel (%p1959) target = $region108
      $region107: #{tpu_custom_call.1} parent=103 // pred_region
        %p1962 = scmp.lt.s32.totalorder %s28, 1
        %s1963 = scalar_select %p1962, %s28, 1
        %p1964 = scmp.lt.s32.totalorder %s29, 0
        %s1965 = scalar_select %p1964, %s29, 0
        %s1966 = smul.addr %s1963, 24
        %s1967 = sadd.s32 %s1965, %s1966
        %s1968 = smul.addr %s1967, 8
        %s1969 = scalar_lea.vmem %s11, %s1968
      $region108: #{tpu_custom_call.1} parent=103 // pred_fallthru
        _
    $region104: #{tpu_custom_call.1} parent=5 // pred_fallthru
      _
  $region6: #{tpu_custom_call.1} parent=0 // loop_footer
    %s21 = sadd.s32 1, %s17
  $region7: #{tpu_custom_call.1} parent=0 // loop_footer_branch
    %16 = sbr.rel target = $region3
  $region8: #{tpu_custom_call.1} parent=0 // loop_exit
    _

</llo_original>
